<compile_context>
chip_gen: v5e
topology: v5e:2x2
jax: 0.10.0
libtpu: 0.0.40
codegen_flags: <defaults>
</compile_context>

<pallas_src>
import math
import functools

import jax
import jax.numpy as jnp
from jax.experimental import pallas as pl
from jax.experimental.pallas import tpu as pltpu


VMEM_LIMIT = 64 * 1024 * 1024   # safe on v5e/v6e (128 MiB) and v7x (64 MiB)
NEG_INF = -1e30                 # large finite negative (avoids inf-inf NaNs)


def _pick_tile(dim, target, align):
    """Largest tile <= target that divides `dim` and is a multiple of `align`.
    Falls back to the full dim (always a legal TPU block size)."""
    if dim <= target:
        return dim
    t = (target // align) * align
    while t >= align:
        if dim % t == 0:
            return t
        t -= align
    return dim


# --------------------------- generic tiled matmul ---------------------------

def _matmul_kernel(a_ref, b_ref, o_ref, acc_ref):
    @pl.when(pl.program_id(2) == 0)
    def _():
        acc_ref[...] = jnp.zeros_like(acc_ref)

    acc_ref[...] += jnp.dot(a_ref[...], b_ref[...],
                            preferred_element_type=jnp.float32)

    @pl.when(pl.program_id(2) == pl.num_programs(2) - 1)
    def _():
        o_ref[...] = acc_ref[...].astype(o_ref.dtype)


def matmul(a, b, out_dtype=jnp.float32, tm_t=256, tn_t=512, tk_t=512):
    """(M, K) @ (K, N) -> (M, N). bf16 operands, f32 accumulation."""
    M, K = a.shape
    K2, N = b.shape
    assert K == K2
    tm = _pick_tile(M, tm_t, 8)
    tn = _pick_tile(N, tn_t, 128)
    tk = _pick_tile(K, tk_t, 128)
    return pl.pallas_call(
        _matmul_kernel,
        out_shape=jax.ShapeDtypeStruct((M, N), out_dtype),
        grid=(M // tm, N // tn, K // tk),
        in_specs=[pl.BlockSpec((tm, tk), lambda i, j, k: (i, k)),
                  pl.BlockSpec((tk, tn), lambda i, j, k: (k, j))],
        out_specs=pl.BlockSpec((tm, tn), lambda i, j, k: (i, j)),
        scratch_shapes=[pltpu.VMEM((tm, tn), jnp.float32)],
        compiler_params=pltpu.CompilerParams(
            dimension_semantics=("parallel", "parallel", "arbitrary"),
            vmem_limit_bytes=VMEM_LIMIT),
    )(a, b)


# ---------------------- fused RMSNorm + matmul (N-tiled) ---------------------

def _norm_matmul_kernel(x_ref, nw_ref, w_ref, o_ref, xn_sc, *, eps):
    # Compute the normalized activations once per row-tile (j == 0) into a
    # bf16 scratch, reuse for every N tile of the weight.
    @pl.when(pl.program_id(1) == 0)
    def _():
        x = x_ref[...].astype(jnp.float32)
        var = jnp.mean(x * x, axis=-1, keepdims=True)
        xn = x * jax.lax.rsqrt(var + eps) * nw_ref[...].astype(jnp.float32)
        xn_sc[...] = xn.astype(xn_sc.dtype)

    o_ref[...] = jnp.dot(xn_sc[...], w_ref[...],
                         preferred_element_type=jnp.float32).astype(o_ref.dtype)


def rmsnorm_matmul(x, norm_w, w, eps, out_dtype=jnp.bfloat16,
                   tm_t=256, tn_t=512):
    """out = RMSNorm(x; norm_w) @ w.   x: (M, D) f32, w: (D, N) bf16."""
    M, D = x.shape
    D2, N = w.shape
    assert D == D2
    tm = _pick_tile(M, tm_t, 8)
    tn = _pick_tile(N, tn_t, 128)
    return pl.pallas_call(
        functools.partial(_norm_matmul_kernel, eps=eps),
        out_shape=jax.ShapeDtypeStruct((M, N), out_dtype),
        grid=(M // tm, N // tn),
        in_specs=[pl.BlockSpec((tm, D), lambda i, j: (i, 0)),
                  pl.BlockSpec((1, D), lambda i, j: (0, 0)),
                  pl.BlockSpec((D, tn), lambda i, j: (0, j))],
        out_specs=pl.BlockSpec((tm, tn), lambda i, j: (i, j)),
        scratch_shapes=[pltpu.VMEM((tm, D), jnp.bfloat16)],
        compiler_params=pltpu.CompilerParams(
            dimension_semantics=("parallel", "arbitrary"),
            vmem_limit_bytes=VMEM_LIMIT),
    )(x, norm_w.reshape(1, D), w)


# --------------- fused RMSNorm + SwiGLU FFN (Hf-tiled reduction) -------------

def _ffn_kernel(x_ref, nw_ref, w1_ref, w3_ref, w2_ref, o_ref,
                xn_sc, acc_sc, *, eps):
    hi = pl.program_id(1)

    @pl.when(hi == 0)
    def _():
        x = x_ref[...].astype(jnp.float32)
        var = jnp.mean(x * x, axis=-1, keepdims=True)
        xn = x * jax.lax.rsqrt(var + eps) * nw_ref[...].astype(jnp.float32)
        xn_sc[...] = xn.astype(xn_sc.dtype)
        acc_sc[...] = jnp.zeros_like(acc_sc)

    xn = xn_sc[...]
    h1 = jnp.dot(xn, w1_ref[...], preferred_element_type=jnp.float32)
    h3 = jnp.dot(xn, w3_ref[...], preferred_element_type=jnp.float32)
    g = (h1 * jax.nn.sigmoid(h1) * h3).astype(w2_ref.dtype)
    acc_sc[...] += jnp.dot(g, w2_ref[...], preferred_element_type=jnp.float32)

    @pl.when(hi == pl.num_programs(1) - 1)
    def _():
        o_ref[...] = acc_sc[...].astype(o_ref.dtype)


def feed_forward(x, norm_w, w1, w3, w2, eps, tm_t=256, th_t=512):
    """out = SwiGLU(RMSNorm(x)).  Intermediates never exceed one (tm, th) tile."""
    M, D = x.shape
    Hf = w1.shape[1]
    tm = _pick_tile(M, tm_t, 8)
    th = _pick_tile(Hf, th_t, 128)
    return pl.pallas_call(
        functools.partial(_ffn_kernel, eps=eps),
        out_shape=jax.ShapeDtypeStruct((M, D), jnp.float32),
        grid=(M // tm, Hf // th),
        in_specs=[pl.BlockSpec((tm, D), lambda i, h: (i, 0)),
                  pl.BlockSpec((1, D), lambda i, h: (0, 0)),
                  pl.BlockSpec((D, th), lambda i, h: (0, h)),
                  pl.BlockSpec((D, th), lambda i, h: (0, h)),
                  pl.BlockSpec((th, D), lambda i, h: (h, 0))],
        out_specs=pl.BlockSpec((tm, D), lambda i, h: (i, 0)),
        scratch_shapes=[pltpu.VMEM((tm, D), jnp.bfloat16),
                        pltpu.VMEM((tm, D), jnp.float32)],
        compiler_params=pltpu.CompilerParams(
            dimension_semantics=("parallel", "arbitrary"),
            vmem_limit_bytes=VMEM_LIMIT),
    )(x, norm_w.reshape(1, D), w1, w3, w2)


# ----------------------- flash-style causal attention -----------------------

def _flash_attn_kernel(q_ref, k_ref, v_ref, o_ref, m_sc, l_sc, acc_sc,
                       *, scale, tq, tk):
    qi = pl.program_id(1)
    ki = pl.program_id(2)

    @pl.when(ki == 0)
    def _():
        m_sc[...] = jnp.full_like(m_sc, NEG_INF)
        l_sc[...] = jnp.zeros_like(l_sc)
        acc_sc[...] = jnp.zeros_like(acc_sc)

    q_start = qi * tq
    k_start = ki * tk

    # Skip KV tiles that lie entirely above the causal diagonal.
    @pl.when(k_start <= q_start + tq - 1)
    def _():
        q = q_ref[0]                                   # (tq, hd) bf16
        k = k_ref[0]                                   # (tk, hd) bf16
        v = v_ref[0]                                   # (tk, hd) bf16
        s = jnp.dot(q, k.T, preferred_element_type=jnp.float32) * scale
        row = q_start + jax.lax.broadcasted_iota(jnp.int32, (tq, tk), 0)
        col = k_start + jax.lax.broadcasted_iota(jnp.int32, (tq, tk), 1)
        s = jnp.where(col > row, NEG_INF, s)           # in-kernel causal mask

        m_prev = m_sc[...]
        m_new = jnp.maximum(m_prev, jnp.max(s, axis=-1, keepdims=True))
        alpha = jnp.exp(m_prev - m_new)
        p = jnp.exp(s - m_new)
        l_sc[...] = alpha * l_sc[...] + jnp.sum(p, axis=-1, keepdims=True)
        acc_sc[...] = alpha * acc_sc[...] + jnp.dot(
            p.astype(v.dtype), v, preferred_element_type=jnp.float32)
        m_sc[...] = m_new

    @pl.when(ki == pl.num_programs(2) - 1)
    def _():
        o_ref[0] = (acc_sc[...] *
                    pl.reciprocal(l_sc[...], approx=True)).astype(o_ref.dtype)


def flash_attention(q, k, v, head_dim, tq_t=256, tk_t=512):
    """q, k, v: (B*H, S, hd) bf16 -> (B*H, S, hd) bf16, causal attention."""
    BH, S, hd = q.shape
    scale = 1.0 / math.sqrt(head_dim)
    tq = _pick_tile(S, tq_t, 8)
    tk = _pick_tile(S, tk_t, 8)
    # TODO(synk): at real sizes keep hd = 128 as the lane dimension; the toy
    # config uses hd = 8 which underfills vregs but is still correct.
    return pl.pallas_call(
        functools.partial(_flash_attn_kernel, scale=scale, tq=tq, tk=tk),
        out_shape=jax.ShapeDtypeStruct((BH, S, hd), q.dtype),
        grid=(BH, S // tq, S // tk),
        in_specs=[pl.BlockSpec((1, tq, hd), lambda b, i, j: (b, i, 0)),
                  pl.BlockSpec((1, tk, hd), lambda b, i, j: (b, j, 0)),
                  pl.BlockSpec((1, tk, hd), lambda b, i, j: (b, j, 0))],
        out_specs=pl.BlockSpec((1, tq, hd), lambda b, i, j: (b, i, 0)),
        scratch_shapes=[pltpu.VMEM((tq, 1), jnp.float32),
                        pltpu.VMEM((tq, 1), jnp.float32),
                        pltpu.VMEM((tq, hd), jnp.float32)],
        compiler_params=pltpu.CompilerParams(
            dimension_semantics=("parallel", "parallel", "arbitrary"),
            vmem_limit_bytes=VMEM_LIMIT),
    )(q, k, v)


# ------------------------------ JAX glue ------------------------------

def precompute_freqs_cis(dim, end, theta=10000.0):
    freqs = 1.0 / (theta ** (jnp.arange(0, dim, 2)[: dim // 2]
                             .astype(jnp.float32) / dim))
    t = jnp.arange(end, dtype=jnp.float32)
    freqs = jnp.outer(t, freqs)                # (end, dim/2)
    return jnp.cos(freqs), jnp.sin(freqs)


def apply_rotary_emb(xq, xk, cos, sin):
    """xq/xk: (B, S, H, hd) bf16; cos/sin: (S, hd/2) f32. Rotation in f32."""
    def rot(x):
        xf = x.astype(jnp.float32)
        xr = xf.reshape(*xf.shape[:-1], -1, 2)
        xe, xo = xr[..., 0], xr[..., 1]
        c = cos[None, :, None, :]
        s = sin[None, :, None, :]
        re = xe * c - xo * s
        im = xe * s + xo * c
        return jnp.stack([re, im], axis=-1).reshape(x.shape).astype(x.dtype)
    return rot(xq), rot(xk)


def repeat_kv(x, n_rep):
    if n_rep == 1:
        return x
    b, s, h, d = x.shape
    return jnp.broadcast_to(x[:, :, :, None, :],
                            (b, s, h, n_rep, d)).reshape(b, s, h * n_rep, d)


def init_params(key, *, dim, n_layers, n_heads, vocab_size, ffn_hidden):
    """Deterministic synthetic parameters. Linear weights stored as
    (in, out) == W^T of nn.Linear, in bf16 (MXU operands); norms/embeddings f32."""
    params = {}
    k_emb, key = jax.random.split(key)
    params["tok_embeddings"] = 0.02 * jax.random.normal(
        k_emb, (vocab_size, dim), jnp.float32)
    params["layers"] = []
    for _ in range(n_layers):
        keys = jax.random.split(key, 8)
        key = keys[-1]
        wq = 0.02 * jax.random.normal(keys[0], (dim, dim), jnp.float32)
        wk = 0.02 * jax.random.normal(keys[1], (dim, dim), jnp.float32)
        wv = 0.02 * jax.random.normal(keys[2], (dim, dim), jnp.float32)
        lp = {
            # Q/K/V fused into a single (D, 3D) weight -> one MXU matmul.
            "wqkv": jnp.concatenate([wq, wk, wv], axis=1).astype(jnp.bfloat16),
            "wo": (0.02 * jax.random.normal(keys[3], (dim, dim),
                                            jnp.float32)).astype(jnp.bfloat16),
            "w1": (0.02 * jax.random.normal(keys[4], (dim, ffn_hidden),
                                            jnp.float32)).astype(jnp.bfloat16),
            "w3": (0.02 * jax.random.normal(keys[5], (dim, ffn_hidden),
                                            jnp.float32)).astype(jnp.bfloat16),
            "w2": (0.02 * jax.random.normal(keys[6], (ffn_hidden, dim),
                                            jnp.float32)).astype(jnp.bfloat16),
            "attention_norm": jnp.ones((dim,), jnp.float32),
            "ffn_norm": jnp.ones((dim,), jnp.float32),
        }
        params["layers"].append(lp)
    k_out, key = jax.random.split(key)
    params["norm"] = jnp.ones((dim,), jnp.float32)
    params["output"] = (0.02 * jax.random.normal(
        k_out, (dim, vocab_size), jnp.float32)).astype(jnp.bfloat16)
    return params


def transformer_forward(params, tokens, start_pos, *, n_heads, head_dim,
                        norm_eps, max_seq_len):
    B, S = tokens.shape
    dim = n_heads * head_dim

    # token embedding (gather) -- plain JAX glue; f32 residual stream
    h = params["tok_embeddings"][tokens]                       # (B, S, D)

    cos_full, sin_full = precompute_freqs_cis(head_dim, max_seq_len * 2)
    cos = jax.lax.dynamic_slice_in_dim(cos_full, start_pos, S, axis=0)
    sin = jax.lax.dynamic_slice_in_dim(sin_full, start_pos, S, axis=0)

    n_rep = 1  # n_kv_heads == n_heads in this config

    for lp in params["layers"]:
        # --- attention block: fused RMSNorm + QKV projection (one kernel) ---
        x2d = h.reshape(B * S, dim)
        qkv = rmsnorm_matmul(x2d, lp["attention_norm"], lp["wqkv"], norm_eps)
        qkv = qkv.reshape(B, S, 3 * dim)
        xq = qkv[..., :dim].reshape(B, S, n_heads, head_dim)
        xk = qkv[..., dim:2 * dim].reshape(B, S, n_heads, head_dim)
        xv = qkv[..., 2 * dim:].reshape(B, S, n_heads, head_dim)

        xq, xk = apply_rotary_emb(xq, xk, cos, sin)
        xk = repeat_kv(xk, n_rep)
        xv = repeat_kv(xv, n_rep)

        q = jnp.transpose(xq, (0, 2, 1, 3)).reshape(B * n_heads, S, head_dim)
        k = jnp.transpose(xk, (0, 2, 1, 3)).reshape(B * n_heads, S, head_dim)
        v = jnp.transpose(xv, (0, 2, 1, 3)).reshape(B * n_heads, S, head_dim)

        attn = flash_attention(q, k, v, head_dim)              # (B*H, S, hd)
        attn = attn.reshape(B, n_heads, S, head_dim)
        attn = jnp.transpose(attn, (0, 2, 1, 3)).reshape(B * S, dim)
        attn_out = matmul(attn, lp["wo"], out_dtype=jnp.float32)

        h = h + attn_out.reshape(B, S, dim)

        # --- FFN block: fused RMSNorm + SwiGLU, Hf-tiled accumulation ---
        ff = feed_forward(h.reshape(B * S, dim), lp["ffn_norm"],
                          lp["w1"], lp["w3"], lp["w2"], norm_eps)
        h = h + ff.reshape(B, S, dim)

    # final RMSNorm fused with the LM head (vocab-tiled)
    logits = rmsnorm_matmul(h.reshape(B * S, dim), params["norm"],
                            params["output"], norm_eps, out_dtype=jnp.float32)
    # TODO(synk): reference `Transformer.forward` returns (output, scores) but
    # `scores` is undefined on the plain-'RoPE' path; we return logits only.
    return logits.reshape(B, S, -1)


# ------------------------------- main -------------------------------

if __name__ == "__main__":
    # Small config consistent with ModelArgs (att_type='RoPE', n_kv_heads=None)
    DIM = 32
    N_LAYERS = 2
    N_HEADS = 4
    HEAD_DIM = DIM // N_HEADS
    VOCAB = 64
    MULTIPLE_OF = 32
    NORM_EPS = 1e-5
    MAX_SEQ_LEN = 16
    B, S = 2, 8
    START_POS = 0

    # FeedForward hidden-dim rule from the module
    hidden = 4 * DIM
    hidden = int(2 * hidden / 3)
    hidden = MULTIPLE_OF * ((hidden + MULTIPLE_OF - 1) // MULTIPLE_OF)

    key = jax.random.PRNGKey(0)
    k_params, k_tok = jax.random.split(key)
    params = init_params(k_params, dim=DIM, n_layers=N_LAYERS,
                         n_heads=N_HEADS, vocab_size=VOCAB,
                         ffn_hidden=hidden)
    tokens = jax.random.randint(k_tok, (B, S), 0, VOCAB, dtype=jnp.int32)

    fwd = jax.jit(functools.partial(transformer_forward, n_heads=N_HEADS,
                                    head_dim=HEAD_DIM, norm_eps=NORM_EPS,
                                    max_seq_len=MAX_SEQ_LEN))
    logits = fwd(params, tokens, START_POS)
    logits = jax.block_until_ready(logits)

    assert logits.shape == (B, S, VOCAB)
    assert logits.dtype == jnp.float32
    assert bool(jnp.all(jnp.isfinite(logits)))
    print("KERNEL_OK")
</pallas_src>

<mosaic_0001>
module attributes {stable_mosaic.version = 11 : i64} {
  func.func @_norm_matmul_kernel(%arg0: i32, %arg1: i32, %arg2: memref<16x32xf32, #tpu.memory_space<vmem>>, %arg3: memref<1x32xf32, #tpu.memory_space<vmem>>, %arg4: memref<32x96xbf16, #tpu.memory_space<vmem>>, %arg5: memref<16x96xbf16, #tpu.memory_space<vmem>>, %arg6: memref<16x32xbf16, #tpu.memory_space<vmem>>) attributes {dimension_semantics = [#tpu.dimension_semantics<parallel>, #tpu.dimension_semantics<arbitrary>], iteration_bounds = array<i64: 1, 1>, scalar_prefetch = 0 : i64, scratch_operands = 1 : i64, tpu.core_type = #tpu.core_type<tc>, window_params = [{transform_indices = @transform_0, window_bounds = array<i64: 16, 32>}, {pipeline_mode = #tpu.pipeline_mode<synchronous>, transform_indices = @transform_1, window_bounds = array<i64: 1, 32>}, {transform_indices = @transform_2, window_bounds = array<i64: 32, 96>}, {transform_indices = @transform_3, window_bounds = array<i64: 16, 96>}]} {
    %c0_i32 = arith.constant 0 : i32
    %0 = arith.cmpi eq, %arg1, %c0_i32 : i32
    %1 = arith.extui %0 : i1 to i32
    %c0_i32_0 = arith.constant 0 : i32
    %2 = arith.cmpi ne, %1, %c0_i32_0 : i32
    scf.if %2 {
      %c0_6 = arith.constant 0 : index
      %c0_7 = arith.constant 0 : index
      %8 = vector.load %arg2[%c0_6, %c0_7] : memref<16x32xf32, #tpu.memory_space<vmem>>, vector<16x32xf32>
      %9 = arith.mulf %8, %8 : vector<16x32xf32>
      %cst_8 = arith.constant dense<0.000000e+00> : vector<16xf32>
      %10 = vector.multi_reduction <add>, %9, %cst_8 [1] : vector<16x32xf32> to vector<16xf32>
      %11 = vector.shape_cast %10 : vector<16xf32> to vector<16x1xf32>
      %cst_9 = arith.constant 3.200000e+01 : f32
      %12 = vector.broadcast %cst_9 : f32 to vector<16x1xf32>
      %13 = arith.divf %11, %12 : vector<16x1xf32>
      %cst_10 = arith.constant 9.99999974E-6 : f32
      %14 = vector.broadcast %cst_10 : f32 to vector<16x1xf32>
      %15 = arith.addf %13, %14 : vector<16x1xf32>
      %16 = math.rsqrt %15 : vector<16x1xf32>
      %17 = vector.broadcast %16 : vector<16x1xf32> to vector<16x32xf32>
      %18 = arith.mulf %8, %17 : vector<16x32xf32>
      %c0_11 = arith.constant 0 : index
      %c0_12 = arith.constant 0 : index
      %19 = vector.load %arg3[%c0_11, %c0_12] : memref<1x32xf32, #tpu.memory_space<vmem>>, vector<1x32xf32>
      %20 = vector.broadcast %19 : vector<1x32xf32> to vector<16x32xf32>
      %21 = arith.mulf %18, %20 : vector<16x32xf32>
      %22 = arith.truncf %21 : vector<16x32xf32> to vector<16x32xbf16>
      %c0_13 = arith.constant 0 : index
      %c0_14 = arith.constant 0 : index
      %23 = vector.load %arg6[%c0_13, %c0_14] : memref<16x32xbf16, #tpu.memory_space<vmem>>, vector<16x32xbf16>
      tpu.vector_store %arg6[%c0_13, %c0_14], %22 {strides = array<i32>} : memref<16x32xbf16, #tpu.memory_space<vmem>>, vector<16x32xbf16>,
    } else {
    }
    %c0 = arith.constant 0 : index
    %c0_1 = arith.constant 0 : index
    %3 = vector.load %arg6[%c0, %c0_1] : memref<16x32xbf16, #tpu.memory_space<vmem>>, vector<16x32xbf16>
    %c0_2 = arith.constant 0 : index
    %c0_3 = arith.constant 0 : index
    %4 = vector.load %arg4[%c0_2, %c0_3] : memref<32x96xbf16, #tpu.memory_space<vmem>>, vector<32x96xbf16>
    %cst = arith.constant dense<0.000000e+00> : vector<16x96xf32>
    %5 = tpu.matmul %3, %4, %cst {dimension_numbers = #tpu.dot_dimension_numbers<[1], [0], [0], [1], [0, 0, 1, 1], [], []>} : vector<16x32xbf16>, vector<32x96xbf16>, vector<16x96xf32> -> vector<16x96xf32>
    %6 = arith.truncf %5 : vector<16x96xf32> to vector<16x96xbf16>
    %c0_4 = arith.constant 0 : index
    %c0_5 = arith.constant 0 : index
    %7 = vector.load %arg5[%c0_4, %c0_5] : memref<16x96xbf16, #tpu.memory_space<vmem>>, vector<16x96xbf16>
    tpu.vector_store %arg5[%c0_4, %c0_5], %6 {strides = array<i32>} : memref<16x96xbf16, #tpu.memory_space<vmem>>, vector<16x96xbf16>,
    return
  }
  func.func @transform_0(%arg0: i32, %arg1: i32) -> (i32, i32) {
    %c0_i32 = arith.constant 0 : i32
    %c0_i32_0 = arith.constant 0 : i32
    return %arg0, %c0_i32 : i32, i32
  }
  func.func @transform_1(%arg0: i32, %arg1: i32) -> (i32, i32) {
    %c0_i32 = arith.constant 0 : i32
    %c0_i32_0 = arith.constant 0 : i32
    %c0_i32_1 = arith.constant 0 : i32
    return %c0_i32, %c0_i32_0 : i32, i32
  }
  func.func @transform_2(%arg0: i32, %arg1: i32) -> (i32, i32) {
    %c0_i32 = arith.constant 0 : i32
    %c0_i32_0 = arith.constant 0 : i32
    return %c0_i32, %arg1 : i32, i32
  }
  func.func @transform_3(%arg0: i32, %arg1: i32) -> (i32, i32) {
    %c0_i32 = arith.constant 0 : i32
    return %arg0, %arg1 : i32, i32
  }
}

module attributes {stable_mosaic.version = 11 : i64} {
  func.func @_flash_attn_kernel(%arg0: i32, %arg1: i32, %arg2: i32, %arg3: memref<1x8x8xbf16, #tpu.memory_space<vmem>>, %arg4: memref<1x8x8xbf16, #tpu.memory_space<vmem>>, %arg5: memref<1x8x8xbf16, #tpu.memory_space<vmem>>, %arg6: memref<1x8x8xbf16, #tpu.memory_space<vmem>>, %arg7: memref<8x1xf32, #tpu.memory_space<vmem>>, %arg8: memref<8x1xf32, #tpu.memory_space<vmem>>, %arg9: memref<8x8xf32, #tpu.memory_space<vmem>>) attributes {dimension_semantics = [#tpu.dimension_semantics<parallel>, #tpu.dimension_semantics<parallel>, #tpu.dimension_semantics<arbitrary>], iteration_bounds = array<i64: 8, 1, 1>, scalar_prefetch = 0 : i64, scratch_operands = 3 : i64, tpu.core_type = #tpu.core_type<tc>, window_params = [{transform_indices = @transform_0, window_bounds = array<i64: 1, 8, 8>}, {transform_indices = @transform_1, window_bounds = array<i64: 1, 8, 8>}, {transform_indices = @transform_2, window_bounds = array<i64: 1, 8, 8>}, {transform_indices = @transform_3, window_bounds = array<i64: 1, 8, 8>}]} {
    %c0_i32 = arith.constant 0 : i32
    %0 = arith.cmpi eq, %arg2, %c0_i32 : i32
    %1 = arith.extui %0 : i1 to i32
    %c0_i32_0 = arith.constant 0 : i32
    %2 = arith.cmpi ne, %1, %c0_i32_0 : i32
    scf.if %2 {
      %cst = arith.constant -1.000000e+30 : f32
      %13 = vector.broadcast %cst : f32 to vector<8x1xf32>
      %c0 = arith.constant 0 : index
      %c0_6 = arith.constant 0 : index
      %14 = vector.load %arg7[%c0, %c0_6] : memref<8x1xf32, #tpu.memory_space<vmem>>, vector<8x1xf32>
      tpu.vector_store %arg7[%c0, %c0_6], %13 {strides = array<i32>} : memref<8x1xf32, #tpu.memory_space<vmem>>, vector<8x1xf32>,
      %cst_7 = arith.constant 0.000000e+00 : f32
      %15 = vector.broadcast %cst_7 : f32 to vector<8x1xf32>
      %c0_8 = arith.constant 0 : index
      %c0_9 = arith.constant 0 : index
      %16 = vector.load %arg8[%c0_8, %c0_9] : memref<8x1xf32, #tpu.memory_space<vmem>>, vector<8x1xf32>
      tpu.vector_store %arg8[%c0_8, %c0_9], %15 {strides = array<i32>} : memref<8x1xf32, #tpu.memory_space<vmem>>, vector<8x1xf32>,
      %cst_10 = arith.constant 0.000000e+00 : f32
      %17 = vector.broadcast %cst_10 : f32 to vector<8x8xf32>
      %c0_11 = arith.constant 0 : index
      %c0_12 = arith.constant 0 : index
      %18 = vector.load %arg9[%c0_11, %c0_12] : memref<8x8xf32, #tpu.memory_space<vmem>>, vector<8x8xf32>
      tpu.vector_store %arg9[%c0_11, %c0_12], %17 {strides = array<i32>} : memref<8x8xf32, #tpu.memory_space<vmem>>, vector<8x8xf32>,
    } else {
    }
    %c8_i32 = arith.constant 8 : i32
    %3 = arith.muli %arg1, %c8_i32 : i32
    %c8_i32_1 = arith.constant 8 : i32
    %4 = arith.muli %arg2, %c8_i32_1 : i32
    %c8_i32_2 = arith.constant 8 : i32
    %5 = arith.addi %3, %c8_i32_2 : i32
    %c1_i32 = arith.constant 1 : i32
    %6 = arith.subi %5, %c1_i32 : i32
    %7 = arith.cmpi sle, %4, %6 : i32
    %8 = arith.extui %7 : i1 to i32
    %c0_i32_3 = arith.constant 0 : i32
    %9 = arith.cmpi ne, %8, %c0_i32_3 : i32
    scf.if %9 {
      %c0 = arith.constant 0 : index
      %c0_6 = arith.constant 0 : index
      %c0_7 = arith.constant 0 : index
      %13 = vector.load %arg3[%c0, %c0_6, %c0_7] : memref<1x8x8xbf16, #tpu.memory_space<vmem>>, vector<1x8x8xbf16>
      %14 = vector.shape_cast %13 : vector<1x8x8xbf16> to vector<8x8xbf16>
      %c0_8 = arith.constant 0 : index
      %c0_9 = arith.constant 0 : index
      %c0_10 = arith.constant 0 : index
      %15 = vector.load %arg4[%c0_8, %c0_9, %c0_10] : memref<1x8x8xbf16, #tpu.memory_space<vmem>>, vector<1x8x8xbf16>
      %16 = vector.shape_cast %15 : vector<1x8x8xbf16> to vector<8x8xbf16>
      %c0_11 = arith.constant 0 : index
      %c0_12 = arith.constant 0 : index
      %c0_13 = arith.constant 0 : index
      %17 = vector.load %arg5[%c0_11, %c0_12, %c0_13] : memref<1x8x8xbf16, #tpu.memory_space<vmem>>, vector<1x8x8xbf16>
      %18 = vector.shape_cast %17 : vector<1x8x8xbf16> to vector<8x8xbf16>
      %19 = tpu.transpose %16, [1, 0] : vector<8x8xbf16> -> vector<8x8xbf16>
      %cst = arith.constant dense<0.000000e+00> : vector<8x8xf32>
      %20 = tpu.matmul %14, %19, %cst {dimension_numbers = #tpu.dot_dimension_numbers<[1], [0], [0], [1], [0, 0, 1, 1], [], []>} : vector<8x8xbf16>, vector<8x8xbf16>, vector<8x8xf32> -> vector<8x8xf32>
      %cst_14 = arith.constant 0.353553385 : f32
      %21 = vector.broadcast %cst_14 : f32 to vector<8x8xf32>
      %22 = arith.mulf %20, %21 : vector<8x8xf32>
      %23 = tpu.iota {dimensions = array<i32: 0>} : vector<8x8xi32>
      %24 = vector.broadcast %3 : i32 to vector<8x8xi32>
      %25 = arith.addi %24, %23 : vector<8x8xi32>
      %26 = tpu.iota {dimensions = array<i32: 1>} : vector<8x8xi32>
      %27 = vector.broadcast %4 : i32 to vector<8x8xi32>
      %28 = arith.addi %27, %26 : vector<8x8xi32>
      %29 = arith.cmpi sgt, %28, %25 : vector<8x8xi32>
      %cst_15 = arith.constant -1.000000e+30 : f32
      %30 = vector.broadcast %cst_15 : f32 to vector<8x8xf32>
      %31 = arith.select %29, %30, %22 : vector<8x8xi1>, vector<8x8xf32>
      %c0_16 = arith.constant 0 : index
      %c0_17 = arith.constant 0 : index
      %32 = vector.load %arg7[%c0_16, %c0_17] : memref<8x1xf32, #tpu.memory_space<vmem>>, vector<8x1xf32>
      %cst_18 = arith.constant dense<0xFF800000> : vector<8xf32>
      %33 = vector.multi_reduction <maximumf>, %31, %cst_18 [1] : vector<8x8xf32> to vector<8xf32>
      %34 = vector.shape_cast %33 : vector<8xf32> to vector<8x1xf32>
      %35 = arith.maximumf %32, %34 : vector<8x1xf32>
      %36 = arith.subf %32, %35 : vector<8x1xf32>
      %37 = math.exp %36 : vector<8x1xf32>
      %38 = vector.broadcast %35 : vector<8x1xf32> to vector<8x8xf32>
      %39 = arith.subf %31, %38 : vector<8x8xf32>
      %40 = math.exp %39 : vector<8x8xf32>
      %c0_19 = arith.constant 0 : index
      %c0_20 = arith.constant 0 : index
      %41 = vector.load %arg8[%c0_19, %c0_20] : memref<8x1xf32, #tpu.memory_space<vmem>>, vector<8x1xf32>
      %42 = arith.mulf %37, %41 : vector<8x1xf32>
      %cst_21 = arith.constant dense<0.000000e+00> : vector<8xf32>
      %43 = vector.multi_reduction <add>, %40, %cst_21 [1] : vector<8x8xf32> to vector<8xf32>
      %44 = vector.shape_cast %43 : vector<8xf32> to vector<8x1xf32>
      %45 = arith.addf %42, %44 : vector<8x1xf32>
      %c0_22 = arith.constant 0 : index
      %c0_23 = arith.constant 0 : index
      %46 = vector.load %arg8[%c0_22, %c0_23] : memref<8x1xf32, #tpu.memory_space<vmem>>, vector<8x1xf32>
      tpu.vector_store %arg8[%c0_22, %c0_23], %45 {strides = array<i32>} : memref<8x1xf32, #tpu.memory_space<vmem>>, vector<8x1xf32>,
      %c0_24 = arith.constant 0 : index
      %c0_25 = arith.constant 0 : index
      %47 = vector.load %arg9[%c0_24, %c0_25] : memref<8x8xf32, #tpu.memory_space<vmem>>, vector<8x8xf32>
      %48 = vector.broadcast %37 : vector<8x1xf32> to vector<8x8xf32>
      %49 = arith.mulf %48, %47 : vector<8x8xf32>
      %50 = arith.truncf %40 : vector<8x8xf32> to vector<8x8xbf16>
      %cst_26 = arith.constant dense<0.000000e+00> : vector<8x8xf32>
      %51 = tpu.matmul %50, %18, %cst_26 {dimension_numbers = #tpu.dot_dimension_numbers<[1], [0], [0], [1], [0, 0, 1, 1], [], []>} : vector<8x8xbf16>, vector<8x8xbf16>, vector<8x8xf32> -> vector<8x8xf32>
      %52 = arith.addf %49, %51 : vector<8x8xf32>
      %c0_27 = arith.constant 0 : index
      %c0_28 = arith.constant 0 : index
      %53 = vector.load %arg9[%c0_27, %c0_28] : memref<8x8xf32, #tpu.memory_space<vmem>>, vector<8x8xf32>
      tpu.vector_store %arg9[%c0_27, %c0_28], %52 {strides = array<i32>} : memref<8x8xf32, #tpu.memory_space<vmem>>, vector<8x8xf32>,
      %c0_29 = arith.constant 0 : index
      %c0_30 = arith.constant 0 : index
      %54 = vector.load %arg7[%c0_29, %c0_30] : memref<8x1xf32, #tpu.memory_space<vmem>>, vector<8x1xf32>
      tpu.vector_store %arg7[%c0_29, %c0_30], %35 {strides = array<i32>} : memref<8x1xf32, #tpu.memory_space<vmem>>, vector<8x1xf32>,
    } else {
    }
    %c0_i32_4 = arith.constant 0 : i32
    %10 = arith.cmpi eq, %arg2, %c0_i32_4 : i32
    %11 = arith.extui %10 : i1 to i32
    %c0_i32_5 = arith.constant 0 : i32
    %12 = arith.cmpi ne, %11, %c0_i32_5 : i32
    scf.if %12 {
      %c0 = arith.constant 0 : index
      %c0_6 = arith.constant 0 : index
      %13 = vector.load %arg9[%c0, %c0_6] : memref<8x8xf32, #tpu.memory_space<vmem>>, vector<8x8xf32>
      %c0_7 = arith.constant 0 : index
      %c0_8 = arith.constant 0 : index
      %14 = vector.load %arg8[%c0_7, %c0_8] : memref<8x1xf32, #tpu.memory_space<vmem>>, vector<8x1xf32>
      %15 = tpu.reciprocal %14 {approx = true} : vector<8x1xf32> -> vector<8x1xf32>
      %16 = vector.broadcast %15 : vector<8x1xf32> to vector<8x8xf32>
      %17 = arith.mulf %13, %16 : vector<8x8xf32>
      %18 = arith.truncf %17 : vector<8x8xf32> to vector<8x8xbf16>
      %c0_9 = arith.constant 0 : index
      %c0_10 = arith.constant 0 : index
      %c0_11 = arith.constant 0 : index
      %19 = vector.load %arg6[%c0_9, %c0_10, %c0_11] : memref<1x8x8xbf16, #tpu.memory_space<vmem>>, vector<1x8x8xbf16>
      %20 = vector.shape_cast %19 : vector<1x8x8xbf16> to vector<8x8xbf16>
      %21 = vector.shape_cast %18 : vector<8x8xbf16> to vector<1x8x8xbf16>
      tpu.vector_store %arg6[%c0_9, %c0_10, %c0_11], %21 {strides = array<i32>} : memref<1x8x8xbf16, #tpu.memory_space<vmem>>, vector<1x8x8xbf16>,
    } else {
    }
    return
  }
  func.func @transform_0(%arg0: i32, %arg1: i32, %arg2: i32) -> (i32, i32, i32) {
    %c0_i32 = arith.constant 0 : i32
    %c0_i32_0 = arith.constant 0 : i32
    return %arg0, %arg1, %c0_i32 : i32, i32, i32
  }
  func.func @transform_1(%arg0: i32, %arg1: i32, %arg2: i32) -> (i32, i32, i32) {
    %c0_i32 = arith.constant 0 : i32
    %c0_i32_0 = arith.constant 0 : i32
    return %arg0, %arg2, %c0_i32 : i32, i32, i32
  }
  func.func @transform_2(%arg0: i32, %arg1: i32, %arg2: i32) -> (i32, i32, i32) {
    %c0_i32 = arith.constant 0 : i32
    %c0_i32_0 = arith.constant 0 : i32
    return %arg0, %arg2, %c0_i32 : i32, i32, i32
  }
  func.func @transform_3(%arg0: i32, %arg1: i32, %arg2: i32) -> (i32, i32, i32) {
    %c0_i32 = arith.constant 0 : i32
    %c0_i32_0 = arith.constant 0 : i32
    return %arg0, %arg1, %c0_i32 : i32, i32, i32
  }
}

module attributes {stable_mosaic.version = 11 : i64} {
  func.func @_matmul_kernel(%arg0: i32, %arg1: i32, %arg2: i32, %arg3: memref<16x32xbf16, #tpu.memory_space<vmem>>, %arg4: memref<32x32xbf16, #tpu.memory_space<vmem>>, %arg5: memref<16x32xf32, #tpu.memory_space<vmem>>, %arg6: memref<16x32xf32, #tpu.memory_space<vmem>>) attributes {dimension_semantics = [#tpu.dimension_semantics<parallel>, #tpu.dimension_semantics<parallel>, #tpu.dimension_semantics<arbitrary>], iteration_bounds = array<i64: 1, 1, 1>, scalar_prefetch = 0 : i64, scratch_operands = 1 : i64, tpu.core_type = #tpu.core_type<tc>, window_params = [{transform_indices = @transform_0, window_bounds = array<i64: 16, 32>}, {transform_indices = @transform_1, window_bounds = array<i64: 32, 32>}, {transform_indices = @transform_2, window_bounds = array<i64: 16, 32>}]} {
    %c0_i32 = arith.constant 0 : i32
    %0 = arith.cmpi eq, %arg2, %c0_i32 : i32
    %1 = arith.extui %0 : i1 to i32
    %c0_i32_0 = arith.constant 0 : i32
    %2 = arith.cmpi ne, %1, %c0_i32_0 : i32
    scf.if %2 {
      %cst_10 = arith.constant 0.000000e+00 : f32
      %12 = vector.broadcast %cst_10 : f32 to vector<16x32xf32>
      %c0_11 = arith.constant 0 : index
      %c0_12 = arith.constant 0 : index
      %13 = vector.load %arg6[%c0_11, %c0_12] : memref<16x32xf32, #tpu.memory_space<vmem>>, vector<16x32xf32>
      tpu.vector_store %arg6[%c0_11, %c0_12], %12 {strides = array<i32>} : memref<16x32xf32, #tpu.memory_space<vmem>>, vector<16x32xf32>,
    } else {
    }
    %c0 = arith.constant 0 : index
    %c0_1 = arith.constant 0 : index
    %3 = vector.load %arg6[%c0, %c0_1] : memref<16x32xf32, #tpu.memory_space<vmem>>, vector<16x32xf32>
    %c0_2 = arith.constant 0 : index
    %c0_3 = arith.constant 0 : index
    %4 = vector.load %arg3[%c0_2, %c0_3] : memref<16x32xbf16, #tpu.memory_space<vmem>>, vector<16x32xbf16>
    %c0_4 = arith.constant 0 : index
    %c0_5 = arith.constant 0 : index
    %5 = vector.load %arg4[%c0_4, %c0_5] : memref<32x32xbf16, #tpu.memory_space<vmem>>, vector<32x32xbf16>
    %cst = arith.constant dense<0.000000e+00> : vector<16x32xf32>
    %6 = tpu.matmul %4, %5, %cst {dimension_numbers = #tpu.dot_dimension_numbers<[1], [0], [0], [1], [0, 0, 1, 1], [], []>} : vector<16x32xbf16>, vector<32x32xbf16>, vector<16x32xf32> -> vector<16x32xf32>
    %7 = arith.addf %3, %6 : vector<16x32xf32>
    %c0_6 = arith.constant 0 : index
    %c0_7 = arith.constant 0 : index
    %8 = vector.load %arg6[%c0_6, %c0_7] : memref<16x32xf32, #tpu.memory_space<vmem>>, vector<16x32xf32>
    tpu.vector_store %arg6[%c0_6, %c0_7], %7 {strides = array<i32>} : memref<16x32xf32, #tpu.memory_space<vmem>>, vector<16x32xf32>,
    %c0_i32_8 = arith.constant 0 : i32
    %9 = arith.cmpi eq, %arg2, %c0_i32_8 : i32
    %10 = arith.extui %9 : i1 to i32
    %c0_i32_9 = arith.constant 0 : i32
    %11 = arith.cmpi ne, %10, %c0_i32_9 : i32
    scf.if %11 {
      %c0_10 = arith.constant 0 : index
      %c0_11 = arith.constant 0 : index
      %12 = vector.load %arg6[%c0_10, %c0_11] : memref<16x32xf32, #tpu.memory_space<vmem>>, vector<16x32xf32>
      %c0_12 = arith.constant 0 : index
      %c0_13 = arith.constant 0 : index
      %13 = vector.load %arg5[%c0_12, %c0_13] : memref<16x32xf32, #tpu.memory_space<vmem>>, vector<16x32xf32>
      tpu.vector_store %arg5[%c0_12, %c0_13], %12 {strides = array<i32>} : memref<16x32xf32, #tpu.memory_space<vmem>>, vector<16x32xf32>,
    } else {
    }
    return
  }
  func.func @transform_0(%arg0: i32, %arg1: i32, %arg2: i32) -> (i32, i32) {
    %c0_i32 = arith.constant 0 : i32
    return %arg0, %arg2 : i32, i32
  }
  func.func @transform_1(%arg0: i32, %arg1: i32, %arg2: i32) -> (i32, i32) {
    %c0_i32 = arith.constant 0 : i32
    return %arg2, %arg1 : i32, i32
  }
  func.func @transform_2(%arg0: i32, %arg1: i32, %arg2: i32) -> (i32, i32) {
    %c0_i32 = arith.constant 0 : i32
    return %arg0, %arg1 : i32, i32
  }
}

module attributes {stable_mosaic.version = 11 : i64} {
  func.func @_ffn_kernel(%arg0: i32, %arg1: i32, %arg2: memref<16x32xf32, #tpu.memory_space<vmem>>, %arg3: memref<1x32xf32, #tpu.memory_space<vmem>>, %arg4: memref<32x96xbf16, #tpu.memory_space<vmem>>, %arg5: memref<32x96xbf16, #tpu.memory_space<vmem>>, %arg6: memref<96x32xbf16, #tpu.memory_space<vmem>>, %arg7: memref<16x32xf32, #tpu.memory_space<vmem>>, %arg8: memref<16x32xbf16, #tpu.memory_space<vmem>>, %arg9: memref<16x32xf32, #tpu.memory_space<vmem>>) attributes {dimension_semantics = [#tpu.dimension_semantics<parallel>, #tpu.dimension_semantics<arbitrary>], iteration_bounds = array<i64: 1, 1>, scalar_prefetch = 0 : i64, scratch_operands = 2 : i64, tpu.core_type = #tpu.core_type<tc>, window_params = [{transform_indices = @transform_0, window_bounds = array<i64: 16, 32>}, {pipeline_mode = #tpu.pipeline_mode<synchronous>, transform_indices = @transform_1, window_bounds = array<i64: 1, 32>}, {transform_indices = @transform_2, window_bounds = array<i64: 32, 96>}, {transform_indices = @transform_3, window_bounds = array<i64: 32, 96>}, {transform_indices = @transform_4, window_bounds = array<i64: 96, 32>}, {transform_indices = @transform_5, window_bounds = array<i64: 16, 32>}]} {
    %c0_i32 = arith.constant 0 : i32
    %0 = arith.cmpi eq, %arg1, %c0_i32 : i32
    %1 = arith.extui %0 : i1 to i32
    %c0_i32_0 = arith.constant 0 : i32
    %2 = arith.cmpi ne, %1, %c0_i32_0 : i32
    scf.if %2 {
      %c0_17 = arith.constant 0 : index
      %c0_18 = arith.constant 0 : index
      %24 = vector.load %arg2[%c0_17, %c0_18] : memref<16x32xf32, #tpu.memory_space<vmem>>, vector<16x32xf32>
      %25 = arith.mulf %24, %24 : vector<16x32xf32>
      %cst_19 = arith.constant dense<0.000000e+00> : vector<16xf32>
      %26 = vector.multi_reduction <add>, %25, %cst_19 [1] : vector<16x32xf32> to vector<16xf32>
      %27 = vector.shape_cast %26 : vector<16xf32> to vector<16x1xf32>
      %cst_20 = arith.constant 3.200000e+01 : f32
      %28 = vector.broadcast %cst_20 : f32 to vector<16x1xf32>
      %29 = arith.divf %27, %28 : vector<16x1xf32>
      %cst_21 = arith.constant 9.99999974E-6 : f32
      %30 = vector.broadcast %cst_21 : f32 to vector<16x1xf32>
      %31 = arith.addf %29, %30 : vector<16x1xf32>
      %32 = math.rsqrt %31 : vector<16x1xf32>
      %33 = vector.broadcast %32 : vector<16x1xf32> to vector<16x32xf32>
      %34 = arith.mulf %24, %33 : vector<16x32xf32>
      %c0_22 = arith.constant 0 : index
      %c0_23 = arith.constant 0 : index
      %35 = vector.load %arg3[%c0_22, %c0_23] : memref<1x32xf32, #tpu.memory_space<vmem>>, vector<1x32xf32>
      %36 = vector.broadcast %35 : vector<1x32xf32> to vector<16x32xf32>
      %37 = arith.mulf %34, %36 : vector<16x32xf32>
      %38 = arith.truncf %37 : vector<16x32xf32> to vector<16x32xbf16>
      %c0_24 = arith.constant 0 : index
      %c0_25 = arith.constant 0 : index
      %39 = vector.load %arg8[%c0_24, %c0_25] : memref<16x32xbf16, #tpu.memory_space<vmem>>, vector<16x32xbf16>
      tpu.vector_store %arg8[%c0_24, %c0_25], %38 {strides = array<i32>} : memref<16x32xbf16, #tpu.memory_space<vmem>>, vector<16x32xbf16>,
      %cst_26 = arith.constant 0.000000e+00 : f32
      %40 = vector.broadcast %cst_26 : f32 to vector<16x32xf32>
      %c0_27 = arith.constant 0 : index
      %c0_28 = arith.constant 0 : index
      %41 = vector.load %arg9[%c0_27, %c0_28] : memref<16x32xf32, #tpu.memory_space<vmem>>, vector<16x32xf32>
      tpu.vector_store %arg9[%c0_27, %c0_28], %40 {strides = array<i32>} : memref<16x32xf32, #tpu.memory_space<vmem>>, vector<16x32xf32>,
    } else {
    }
    %c0 = arith.constant 0 : index
    %c0_1 = arith.constant 0 : index
    %3 = vector.load %arg8[%c0, %c0_1] : memref<16x32xbf16, #tpu.memory_space<vmem>>, vector<16x32xbf16>
    %c0_2 = arith.constant 0 : index
    %c0_3 = arith.constant 0 : index
    %4 = vector.load %arg4[%c0_2, %c0_3] : memref<32x96xbf16, #tpu.memory_space<vmem>>, vector<32x96xbf16>
    %cst = arith.constant dense<0.000000e+00> : vector<16x96xf32>
    %5 = tpu.matmul %3, %4, %cst {dimension_numbers = #tpu.dot_dimension_numbers<[1], [0], [0], [1], [0, 0, 1, 1], [], []>} : vector<16x32xbf16>, vector<32x96xbf16>, vector<16x96xf32> -> vector<16x96xf32>
    %c0_4 = arith.constant 0 : index
    %c0_5 = arith.constant 0 : index
    %6 = vector.load %arg5[%c0_4, %c0_5] : memref<32x96xbf16, #tpu.memory_space<vmem>>, vector<32x96xbf16>
    %cst_6 = arith.constant dense<0.000000e+00> : vector<16x96xf32>
    %7 = tpu.matmul %3, %6, %cst_6 {dimension_numbers = #tpu.dot_dimension_numbers<[1], [0], [0], [1], [0, 0, 1, 1], [], []>} : vector<16x32xbf16>, vector<32x96xbf16>, vector<16x96xf32> -> vector<16x96xf32>
    %8 = arith.negf %5 : vector<16x96xf32>
    %9 = math.exp %8 : vector<16x96xf32>
    %cst_7 = arith.constant 1.000000e+00 : f32
    %10 = vector.broadcast %cst_7 : f32 to vector<16x96xf32>
    %11 = arith.addf %10, %9 : vector<16x96xf32>
    %12 = arith.divf %10, %11 : vector<16x96xf32>
    %13 = arith.mulf %5, %12 : vector<16x96xf32>
    %14 = arith.mulf %13, %7 : vector<16x96xf32>
    %15 = arith.truncf %14 : vector<16x96xf32> to vector<16x96xbf16>
    %c0_8 = arith.constant 0 : index
    %c0_9 = arith.constant 0 : index
    %16 = vector.load %arg9[%c0_8, %c0_9] : memref<16x32xf32, #tpu.memory_space<vmem>>, vector<16x32xf32>
    %c0_10 = arith.constant 0 : index
    %c0_11 = arith.constant 0 : index
    %17 = vector.load %arg6[%c0_10, %c0_11] : memref<96x32xbf16, #tpu.memory_space<vmem>>, vector<96x32xbf16>
    %cst_12 = arith.constant dense<0.000000e+00> : vector<16x32xf32>
    %18 = tpu.matmul %15, %17, %cst_12 {dimension_numbers = #tpu.dot_dimension_numbers<[1], [0], [0], [1], [0, 0, 1, 1], [], []>} : vector<16x96xbf16>, vector<96x32xbf16>, vector<16x32xf32> -> vector<16x32xf32>
    %19 = arith.addf %16, %18 : vector<16x32xf32>
    %c0_13 = arith.constant 0 : index
    %c0_14 = arith.constant 0 : index
    %20 = vector.load %arg9[%c0_13, %c0_14] : memref<16x32xf32, #tpu.memory_space<vmem>>, vector<16x32xf32>
    tpu.vector_store %arg9[%c0_13, %c0_14], %19 {strides = array<i32>} : memref<16x32xf32, #tpu.memory_space<vmem>>, vector<16x32xf32>,
    %c0_i32_15 = arith.constant 0 : i32
    %21 = arith.cmpi eq, %arg1, %c0_i32_15 : i32
    %22 = arith.extui %21 : i1 to i32
    %c0_i32_16 = arith.constant 0 : i32
    %23 = arith.cmpi ne, %22, %c0_i32_16 : i32
    scf.if %23 {
      %c0_17 = arith.constant 0 : index
      %c0_18 = arith.constant 0 : index
      %24 = vector.load %arg9[%c0_17, %c0_18] : memref<16x32xf32, #tpu.memory_space<vmem>>, vector<16x32xf32>
      %c0_19 = arith.constant 0 : index
      %c0_20 = arith.constant 0 : index
      %25 = vector.load %arg7[%c0_19, %c0_20] : memref<16x32xf32, #tpu.memory_space<vmem>>, vector<16x32xf32>
      tpu.vector_store %arg7[%c0_19, %c0_20], %24 {strides = array<i32>} : memref<16x32xf32, #tpu.memory_space<vmem>>, vector<16x32xf32>,
    } else {
    }
    return
  }
  func.func @transform_0(%arg0: i32, %arg1: i32) -> (i32, i32) {
    %c0_i32 = arith.constant 0 : i32
    %c0_i32_0 = arith.constant 0 : i32
    return %arg0, %c0_i32 : i32, i32
  }
  func.func @transform_1(%arg0: i32, %arg1: i32) -> (i32, i32) {
    %c0_i32 = arith.constant 0 : i32
    %c0_i32_0 = arith.constant 0 : i32
    %c0_i32_1 = arith.constant 0 : i32
    return %c0_i32, %c0_i32_0 : i32, i32
  }
  func.func @transform_2(%arg0: i32, %arg1: i32) -> (i32, i32) {
    %c0_i32 = arith.constant 0 : i32
    %c0_i32_0 = arith.constant 0 : i32
    return %c0_i32, %arg1 : i32, i32
  }
  func.func @transform_3(%arg0: i32, %arg1: i32) -> (i32, i32) {
    %c0_i32 = arith.constant 0 : i32
    %c0_i32_0 = arith.constant 0 : i32
    return %c0_i32, %arg1 : i32, i32
  }
  func.func @transform_4(%arg0: i32, %arg1: i32) -> (i32, i32) {
    %c0_i32 = arith.constant 0 : i32
    %c0_i32_0 = arith.constant 0 : i32
    return %arg1, %c0_i32 : i32, i32
  }
  func.func @transform_5(%arg0: i32, %arg1: i32) -> (i32, i32) {
    %c0_i32 = arith.constant 0 : i32
    %c0_i32_0 = arith.constant 0 : i32
    return %arg0, %c0_i32 : i32, i32
  }
}

module attributes {stable_mosaic.version = 11 : i64} {
  func.func @_norm_matmul_kernel(%arg0: i32, %arg1: i32, %arg2: memref<16x32xf32, #tpu.memory_space<vmem>>, %arg3: memref<1x32xf32, #tpu.memory_space<vmem>>, %arg4: memref<32x64xbf16, #tpu.memory_space<vmem>>, %arg5: memref<16x64xf32, #tpu.memory_space<vmem>>, %arg6: memref<16x32xbf16, #tpu.memory_space<vmem>>) attributes {dimension_semantics = [#tpu.dimension_semantics<parallel>, #tpu.dimension_semantics<arbitrary>], iteration_bounds = array<i64: 1, 1>, scalar_prefetch = 0 : i64, scratch_operands = 1 : i64, tpu.core_type = #tpu.core_type<tc>, window_params = [{transform_indices = @transform_0, window_bounds = array<i64: 16, 32>}, {pipeline_mode = #tpu.pipeline_mode<synchronous>, transform_indices = @transform_1, window_bounds = array<i64: 1, 32>}, {transform_indices = @transform_2, window_bounds = array<i64: 32, 64>}, {transform_indices = @transform_3, window_bounds = array<i64: 16, 64>}]} {
    %c0_i32 = arith.constant 0 : i32
    %0 = arith.cmpi eq, %arg1, %c0_i32 : i32
    %1 = arith.extui %0 : i1 to i32
    %c0_i32_0 = arith.constant 0 : i32
    %2 = arith.cmpi ne, %1, %c0_i32_0 : i32
    scf.if %2 {
      %c0_6 = arith.constant 0 : index
      %c0_7 = arith.constant 0 : index
      %7 = vector.load %arg2[%c0_6, %c0_7] : memref<16x32xf32, #tpu.memory_space<vmem>>, vector<16x32xf32>
      %8 = arith.mulf %7, %7 : vector<16x32xf32>
      %cst_8 = arith.constant dense<0.000000e+00> : vector<16xf32>
      %9 = vector.multi_reduction <add>, %8, %cst_8 [1] : vector<16x32xf32> to vector<16xf32>
      %10 = vector.shape_cast %9 : vector<16xf32> to vector<16x1xf32>
      %cst_9 = arith.constant 3.200000e+01 : f32
      %11 = vector.broadcast %cst_9 : f32 to vector<16x1xf32>
      %12 = arith.divf %10, %11 : vector<16x1xf32>
      %cst_10 = arith.constant 9.99999974E-6 : f32
      %13 = vector.broadcast %cst_10 : f32 to vector<16x1xf32>
      %14 = arith.addf %12, %13 : vector<16x1xf32>
      %15 = math.rsqrt %14 : vector<16x1xf32>
      %16 = vector.broadcast %15 : vector<16x1xf32> to vector<16x32xf32>
      %17 = arith.mulf %7, %16 : vector<16x32xf32>
      %c0_11 = arith.constant 0 : index
      %c0_12 = arith.constant 0 : index
      %18 = vector.load %arg3[%c0_11, %c0_12] : memref<1x32xf32, #tpu.memory_space<vmem>>, vector<1x32xf32>
      %19 = vector.broadcast %18 : vector<1x32xf32> to vector<16x32xf32>
      %20 = arith.mulf %17, %19 : vector<16x32xf32>
      %21 = arith.truncf %20 : vector<16x32xf32> to vector<16x32xbf16>
      %c0_13 = arith.constant 0 : index
      %c0_14 = arith.constant 0 : index
      %22 = vector.load %arg6[%c0_13, %c0_14] : memref<16x32xbf16, #tpu.memory_space<vmem>>, vector<16x32xbf16>
      tpu.vector_store %arg6[%c0_13, %c0_14], %21 {strides = array<i32>} : memref<16x32xbf16, #tpu.memory_space<vmem>>, vector<16x32xbf16>,
    } else {
    }
    %c0 = arith.constant 0 : index
    %c0_1 = arith.constant 0 : index
    %3 = vector.load %arg6[%c0, %c0_1] : memref<16x32xbf16, #tpu.memory_space<vmem>>, vector<16x32xbf16>
    %c0_2 = arith.constant 0 : index
    %c0_3 = arith.constant 0 : index
    %4 = vector.load %arg4[%c0_2, %c0_3] : memref<32x64xbf16, #tpu.memory_space<vmem>>, vector<32x64xbf16>
    %cst = arith.constant dense<0.000000e+00> : vector<16x64xf32>
    %5 = tpu.matmul %3, %4, %cst {dimension_numbers = #tpu.dot_dimension_numbers<[1], [0], [0], [1], [0, 0, 1, 1], [], []>} : vector<16x32xbf16>, vector<32x64xbf16>, vector<16x64xf32> -> vector<16x64xf32>
    %c0_4 = arith.constant 0 : index
    %c0_5 = arith.constant 0 : index
    %6 = vector.load %arg5[%c0_4, %c0_5] : memref<16x64xf32, #tpu.memory_space<vmem>>, vector<16x64xf32>
    tpu.vector_store %arg5[%c0_4, %c0_5], %5 {strides = array<i32>} : memref<16x64xf32, #tpu.memory_space<vmem>>, vector<16x64xf32>,
    return
  }
  func.func @transform_0(%arg0: i32, %arg1: i32) -> (i32, i32) {
    %c0_i32 = arith.constant 0 : i32
    %c0_i32_0 = arith.constant 0 : i32
    return %arg0, %c0_i32 : i32, i32
  }
  func.func @transform_1(%arg0: i32, %arg1: i32) -> (i32, i32) {
    %c0_i32 = arith.constant 0 : i32
    %c0_i32_0 = arith.constant 0 : i32
    %c0_i32_1 = arith.constant 0 : i32
    return %c0_i32, %c0_i32_0 : i32, i32
  }
  func.func @transform_2(%arg0: i32, %arg1: i32) -> (i32, i32) {
    %c0_i32 = arith.constant 0 : i32
    %c0_i32_0 = arith.constant 0 : i32
    return %c0_i32, %arg1 : i32, i32
  }
  func.func @transform_3(%arg0: i32, %arg1: i32) -> (i32, i32) {
    %c0_i32 = arith.constant 0 : i32
    return %arg0, %arg1 : i32, i32
  }
}

</mosaic_0001>

<llo_original>
// kernel: transformer_forward.9
$region0: #{transformer_forward.9}
  #allocation0 [shape = 'u32[]', space=smem, size = 0x4, offset = 0x4, fixed_abs, tag = 'smem constant byte address 0x4 - core index']
  #allocation1 [shape = 'u32[72,128]{1,0:T(1,128)}', space=vmem, size = 0x9000, scoped, tag = 'internal scratch']
  #allocation2 [shape = 'bf16[16,32]{1,0:T(8,128)(2,1)}', space=vmem, size = 0x1000, scoped, tag = 'scratch operand']
  %s0 = inlined_call_operand.vmem [shape: f32[16,32], index: 0, kind: input, shape index: {}]
  %s1 = inlined_call_operand.vmem [shape: f32[1,32], index: 1, kind: input, shape index: {}]
  %s2 = inlined_call_operand.vmem [shape: bf16[32,96], index: 2, kind: input, shape index: {}]
  %s3 = inlined_call_operand.vmem [shape: bf16[16,96], index: 3, kind: output, shape index: {}]
  %s4 = sld [smem:[#allocation0]]
  $region26: #{transformer_forward.9} parent=0
    _
  %s6 = ssub.s32 1, %s4
  %s7 = scalar_select 0, %s6, %s4
  // Predicated region
  $region2: #{transformer_forward.9} parent=0 // pred_check
    _
  $region3: #{transformer_forward.9} parent=0 // pred_check_branch
    %9 = sbr.rel (0) target = $region5
  $region4: #{transformer_forward.9} parent=0 // pred_region
    _
  $region5: #{transformer_forward.9} parent=0 // pred_fallthru
    _
  // Predicated region
  $region6: #{transformer_forward.9} parent=0 // pred_check
    _
  $region7: #{transformer_forward.9} parent=0 // pred_check_branch
    %11 = sbr.rel (0) target = $region9
  $region8: #{transformer_forward.9} parent=0 // pred_region
    _
  $region9: #{transformer_forward.9} parent=0 // pred_fallthru
    _
  // Predicated region
  $region10: #{transformer_forward.9} parent=0 // pred_check
    _
  $region11: #{transformer_forward.9} parent=0 // pred_check_branch
    %13 = sbr.rel (0) target = $region13
  $region12: #{transformer_forward.9} parent=0 // pred_region
    _
  $region13: #{transformer_forward.9} parent=0 // pred_fallthru
    _
  %p15 = scmp.eq.s32.totalorder 0, 0
  // Predicated region
  $region14: #{transformer_forward.9} parent=0 // pred_check
    %p16 = pneg %p15
  $region15: #{transformer_forward.9} parent=0 // pred_check_branch
    %18 = sbr.rel (%p16) target = $region17
  $region16: #{transformer_forward.9} parent=0 // pred_region
    %v19 = vld [vmem:[%s0] sm:$0xff]
    %v20 = vld [vmem:[%s0 + $0x8] sm:$0xff]
    %v21 = vmul.f32 %v19, %v19
    %v22 = vmul.f32 %v20, %v20
    %vm23 = vcmask 261120
    %v24 = vsel %vm23, %v21, 0.0
    %25 = vadd.xlane.f32.xlu0 %v24
    %v26 = vpop.xlane.xlu0 %25
    %v27 = vsel %vm23, %v22, 0.0
    %28 = vadd.xlane.f32.xlu0 %v27
    %v29 = vpop.xlane.xlu0 %28
    %v30 = vrcp.pop 32.0
    %v31 = vmul.f32 32.0, %v30
    %v32 = vsub.f32 1.0, %v31
    %v33 = vmul.f32 %v30, %v32
    %v34 = vadd.f32 %v30, %v33
    %vm35 = vweird.f32 %v30
    %v36 = vsel %vm35, %v30, %v34
    %v37 = vmul.f32 %v26, %v36
    %v38 = vmul.f32 %v29, %v36
    %v39 = vadd.f32 %v37, 1e-05
    %v40 = vadd.f32 %v38, 1e-05
    %v41 = vrsqrt.pop %v39
    %v42 = vmul.f32 %v41, %v39
    %v43 = vmul.f32 %v42, %v41
    %v44 = vmul.f32 0.5, %v43
    %v45 = vsub.f32 1.5, %v44
    %v46 = vmul.f32 %v41, %v45
    %vm47 = vweird.f32 %v39
    %vm48 = vweird.f32 %v41
    %vm49 = vmor %vm47, %vm48
    %v50 = vsel %vm49, %v41, %v46
    %v51 = vrsqrt.pop %v40
    %v52 = vmul.f32 %v51, %v40
    %v53 = vmul.f32 %v52, %v51
    %v54 = vmul.f32 0.5, %v53
    %v55 = vsub.f32 1.5, %v54
    %v56 = vmul.f32 %v51, %v55
    %vm57 = vweird.f32 %v40
    %vm58 = vweird.f32 %v51
    %vm59 = vmor %vm57, %vm58
    %v60 = vsel %vm59, %v51, %v56
    %v61 = vmul.f32 %v19, %v50
    %v62 = vmul.f32 %v20, %v60
    %v63 = vld [vmem:[%s1] sm:$0x1]
    %v65 = vperm.slane %v63, 0
    %v67 = vmul.f32 %v61, %v65
    %v68 = vmul.f32 %v62, %v65
    %v69 = vpack.c.bf16 %v67, %v67
    %v70 = vpack.c.bf16 %v68, %v68
    %vm71 = vcmask 257024
    %72 = vst.msk [vmem:[#allocation2] sm:$0xf] %vm71, %v69
    %73 = vst.msk [vmem:[#allocation2 + $0x4] sm:$0xf] %vm71, %v70
  $region17: #{transformer_forward.9} parent=0 // pred_fallthru
    _
  %v74 = vld [vmem:[#allocation2] sm:$0xf]
  %v75 = vld [vmem:[#allocation2 + $0x4] sm:$0xf]
  %v76 = vld [vmem:[%s2] sm:$0xf]
  %v77 = vld [vmem:[%s2 + $0x4] sm:$0xf]
  %v78 = vld [vmem:[%s2 + $0x8] sm:$0xf]
  %v79 = vld [vmem:[%s2 + $0xc] sm:$0xf]
  %v82 = vunpack.c.l.b16 %v74
  %v83 = vunpack.c.l.b16 %v75
  %v84 = vpack.c.b16 %v83, %v82
  %v89 = vunpack.c.l.b16 %v76
  %v90 = vunpack.c.l.b16 %v77
  %v91 = vunpack.c.l.b16 %v78
  %v92 = vunpack.c.l.b16 %v79
  %v93 = vpack.c.b16 %v90, %v89
  %v94 = vpack.c.b16 %v92, %v91
  %vm97 = vcmask 261120
  %v99 = vsel %vm97, %v84, 0
  %101 = vmatpush.bf16.msra.mxu0 0
  %102 = vmatpush.bf16.msra.mxu0 0
  %103 = vmatpush.bf16.msra.mxu0 0
  %104 = vmatpush.bf16.msra.mxu0 0
  %105 = vmatpush.bf16.msra.mxu0 0
  %106 = vmatpush.bf16.msra.mxu0 0
  %107 = vmatpush.bf16.msra.mxu0 %v94
  %108 = vmatpush.bf16.msra.mxu0 %v93
  %109 = vmatmul.bf16.gmra.mxu0 %v99
  %v110 = vpop.f32.mrf.mxu0
  %v111 = vadd.f32 0.0, %v110
  %v112 = vpop.f32.mrf.mxu0
  %v113 = vadd.f32 0.0, %v112
  %114 = vdwg.mxu0
  %v115 = vpack.c.bf16 %v111, %v111
  %v116 = vpack.c.bf16 %v113, %v113
  %vm117 = vcmask 781312
  %118 = vst.msk [vmem:[%s3] sm:$0xf] %vm117, %v115
  %119 = vst.msk [vmem:[%s3 + $0x4] sm:$0xf] %vm117, %v116
  // Predicated region
  $region18: #{transformer_forward.9} parent=0 // pred_check
    _
  $region19: #{transformer_forward.9} parent=0 // pred_check_branch
    %121 = sbr.rel (0) target = $region21
  $region20: #{transformer_forward.9} parent=0 // pred_region
    _
  $region21: #{transformer_forward.9} parent=0 // pred_fallthru
    _
  // Predicated region
  $region22: #{transformer_forward.9} parent=0 // pred_check
    _
  $region23: #{transformer_forward.9} parent=0 // pred_check_branch
    %123 = sbr.rel (0) target = $region25
  $region24: #{transformer_forward.9} parent=0 // pred_region
    _
  $region25: #{transformer_forward.9} parent=0 // pred_fallthru
    _

// kernel: transformer_forward.10
$region0: #{transformer_forward.10}
  #allocation0 [shape = 'u32[]', space=smem, size = 0x4, offset = 0x4, fixed_abs, tag = 'smem constant byte address 0x4 - core index']
  #allocation1 [shape = 'u32[72,128]{1,0:T(1,128)}', space=vmem, size = 0x9000, scoped, tag = 'internal scratch']
  #allocation2 [shape = 'f32[8,1]{1,0:T(8,128)}', space=vmem, size = 0x1000, scoped, tag = 'scratch operand']
  #allocation3 [shape = 'f32[8,1]{1,0:T(8,128)}', space=vmem, size = 0x1000, scoped, tag = 'scratch operand']
  #allocation4 [shape = 'f32[8,8]{1,0:T(8,128)}', space=vmem, size = 0x1000, scoped, tag = 'scratch operand']
  %s0 = inlined_call_operand.vmem [shape: bf16[8,8,8], index: 0, kind: input, shape index: {}]
  %s1 = inlined_call_operand.vmem [shape: bf16[8,8,8], index: 1, kind: input, shape index: {}]
  %s2 = inlined_call_operand.vmem [shape: bf16[8,8,8], index: 2, kind: input, shape index: {}]
  %s3 = inlined_call_operand.vmem [shape: bf16[8,8,8], index: 3, kind: output, shape index: {}]
  %s4 = sld [smem:[#allocation0]]
  $region57: #{transformer_forward.10} parent=0
    _
  %s6 = ssub.s32 1, %s4
  %s7 = scalar_select 0, %s6, %s4
  loop: start=0, step=1, limit=10
  $region2: #{transformer_forward.10} parent=0 // loop_pre_header
    _
  $region3: #{transformer_forward.10} parent=0 // loop_header
    %s9 = sphi 0, %s13
    %p10 = scmp.ge.s32.totalorder %s9, 10
    %s16 = sphi 0, %s35
    %s17 = sphi 0, %s31
    %s18 = sphi 0, %s27
    %s19 = sphi 0, %s16
    %s20 = sphi 0, %s17
    %s21 = sphi 0, %s18
    %s22 = sphi 0, %s19
    %s23 = sphi 0, %s20
    %s24 = sphi 0, %s21
    %s40 = sphi 0, %s42
    %s43 = sphi 0, %s40
    %s44 = sphi 0, %s43
    %s60 = sphi 0, %s44
    %s68 = sphi 0, %s70
    %s71 = sphi 0, %s68
    %s72 = sphi 0, %s71
    %s88 = sphi 0, %s72
    %s96 = sphi 0, %s98
    %s99 = sphi 0, %s96
    %s100 = sphi 0, %s99
    %s116 = sphi 0, %s100
    %s124 = sphi 0, %s126
    %s127 = sphi 0, %s124
    %s128 = sphi 0, %s127
    %s144 = sphi 0, %s128
  $region4: #{transformer_forward.10} parent=0 // loop_header_branch
    %12 = sbr.rel (%p10) target = $region8
  $region5: #{transformer_forward.10} parent=0 // loop_body
    %s14 = ssub.s32 %s9, 1
    %s15 = ssub.s32 %s9, 2
    %s25 = sadd.s32 1, %s18
    %p26 = scmp.ge.s32.totalorder %s25, 1
    %s27 = scalar_select %p26, 0, %s25
    %s28 = sadd.s32 1, %s17
    %s29 = scalar_select %p26, %s28, %s17
    %p30 = scmp.ge.s32.totalorder %s29, 1
    %s31 = scalar_select %p30, 0, %s29
    %s32 = sadd.s32 1, %s16
    %s33 = scalar_select %p30, %s32, %s16
    %p34 = scmp.ge.s32.totalorder %s33, 8
    %s35 = scalar_select %p34, 0, %s33
    %s36 = ssub.s32 %s16, %s35
    %s37 = ssub.s32 %s17, %s31
    %s38 = sor.u32 %s36, %s37
    %p39 = scmp.eq.s32.totalorder %s38, 0
    %s41 = sadd.s32 %s40, 1
    %s42 = scalar_select %p39, %s40, %s41
    %p45 = pneg %p39
    %p46 = scmp.eq.s32.totalorder %s9, 7
    %p47 = por %p45, %p46
    %p48 = scmp.ne.s32.totalorder %s40, %s43
    %p49 = scmp.eq.s32.totalorder %s9, 0
    %p50 = por %p48, %p49
    %p51 = scmp.ne.s32.totalorder %s40, %s43
    %p52 = scmp.eq.s32.totalorder %s14, 7
    %p53 = por %p51, %p52
    %p54 = scmp.ne.s32.totalorder %s43, %s44
    %p55 = scmp.eq.s32.totalorder %s14, 0
    %p56 = por %p54, %p55
    %p57 = scmp.ne.s32.totalorder %s43, %s44
    %p58 = scmp.eq.s32.totalorder %s15, 7
    %p59 = por %p57, %p58
    %p61 = scmp.ne.s32.totalorder %s44, %s60
    %p62 = scmp.eq.s32.totalorder %s15, 0
    %p63 = por %p61, %p62
    %s64 = ssub.s32 %s16, %s35
    %s65 = ssub.s32 %s18, %s27
    %s66 = sor.u32 %s64, %s65
    %p67 = scmp.eq.s32.totalorder %s66, 0
    %s69 = sadd.s32 %s68, 1
    %s70 = scalar_select %p67, %s68, %s69
    %p73 = pneg %p67
    %p74 = scmp.eq.s32.totalorder %s9, 7
    %p75 = por %p73, %p74
    %p76 = scmp.ne.s32.totalorder %s68, %s71
    %p77 = scmp.eq.s32.totalorder %s9, 0
    %p78 = por %p76, %p77
    %p79 = scmp.ne.s32.totalorder %s68, %s71
    %p80 = scmp.eq.s32.totalorder %s14, 7
    %p81 = por %p79, %p80
    %p82 = scmp.ne.s32.totalorder %s71, %s72
    %p83 = scmp.eq.s32.totalorder %s14, 0
    %p84 = por %p82, %p83
    %p85 = scmp.ne.s32.totalorder %s71, %s72
    %p86 = scmp.eq.s32.totalorder %s15, 7
    %p87 = por %p85, %p86
    %p89 = scmp.ne.s32.totalorder %s72, %s88
    %p90 = scmp.eq.s32.totalorder %s15, 0
    %p91 = por %p89, %p90
    %s92 = ssub.s32 %s16, %s35
    %s93 = ssub.s32 %s18, %s27
    %s94 = sor.u32 %s92, %s93
    %p95 = scmp.eq.s32.totalorder %s94, 0
    %s97 = sadd.s32 %s96, 1
    %s98 = scalar_select %p95, %s96, %s97
    %p101 = pneg %p95
    %p102 = scmp.eq.s32.totalorder %s9, 7
    %p103 = por %p101, %p102
    %p104 = scmp.ne.s32.totalorder %s96, %s99
    %p105 = scmp.eq.s32.totalorder %s9, 0
    %p106 = por %p104, %p105
    %p107 = scmp.ne.s32.totalorder %s96, %s99
    %p108 = scmp.eq.s32.totalorder %s14, 7
    %p109 = por %p107, %p108
    %p110 = scmp.ne.s32.totalorder %s99, %s100
    %p111 = scmp.eq.s32.totalorder %s14, 0
    %p112 = por %p110, %p111
    %p113 = scmp.ne.s32.totalorder %s99, %s100
    %p114 = scmp.eq.s32.totalorder %s15, 7
    %p115 = por %p113, %p114
    %p117 = scmp.ne.s32.totalorder %s100, %s116
    %p118 = scmp.eq.s32.totalorder %s15, 0
    %p119 = por %p117, %p118
    %s120 = ssub.s32 %s16, %s35
    %s121 = ssub.s32 %s17, %s31
    %s122 = sor.u32 %s120, %s121
    %p123 = scmp.eq.s32.totalorder %s122, 0
    %s125 = sadd.s32 %s124, 1
    %s126 = scalar_select %p123, %s124, %s125
    %p129 = pneg %p123
    %p130 = scmp.eq.s32.totalorder %s9, 7
    %p131 = por %p129, %p130
    %p132 = scmp.ne.s32.totalorder %s124, %s127
    %p133 = scmp.eq.s32.totalorder %s9, 0
    %p134 = por %p132, %p133
    %p135 = scmp.ne.s32.totalorder %s124, %s127
    %p136 = scmp.eq.s32.totalorder %s14, 7
    %p137 = por %p135, %p136
    %p138 = scmp.ne.s32.totalorder %s127, %s128
    %p139 = scmp.eq.s32.totalorder %s14, 0
    %p140 = por %p138, %p139
    %p141 = scmp.ne.s32.totalorder %s127, %s128
    %p142 = scmp.eq.s32.totalorder %s15, 7
    %p143 = por %p141, %p142
    %p145 = scmp.ne.s32.totalorder %s128, %s144
    %p146 = scmp.eq.s32.totalorder %s15, 0
    %p147 = por %p145, %p146
    %p148 = scmp.le.s32.totalorder 1, %s9
    %p149 = scmp.lt.s32.totalorder %s9, 9
    %p150 = pnand %p148, %p149
    %p151 = pneg %p150
    // Predicated region
    $region9: #{transformer_forward.10} parent=5 // pred_check
      _
    $region10: #{transformer_forward.10} parent=5 // pred_check_branch
      %153 = sbr.rel (%p150) target = $region12
    $region11: #{transformer_forward.10} parent=5 // pred_region
      %s154 = ssub.s32 %s9, 1
    $region12: #{transformer_forward.10} parent=5 // pred_fallthru
      _
    %p155 = scmp.lt.s32.totalorder %s9, 8
    // Predicated region
    $region13: #{transformer_forward.10} parent=5 // pred_check
      %p156 = pneg %p155
    $region14: #{transformer_forward.10} parent=5 // pred_check_branch
      %158 = sbr.rel (%p156) target = $region16
    $region15: #{transformer_forward.10} parent=5 // pred_region
      // Predicated region
      $region17: #{transformer_forward.10} parent=15 // pred_check
        %p159 = pneg %p50
      $region18: #{transformer_forward.10} parent=15 // pred_check_branch
        %161 = sbr.rel (%p159) target = $region20
      $region19: #{transformer_forward.10} parent=15 // pred_region
        %p162 = scmp.lt.s32.totalorder %s16, 7
        %s163 = scalar_select %p162, %s16, 7
        %p164 = scmp.lt.s32.totalorder %s17, 0
        %s165 = scalar_select %p164, %s17, 0
        %s166 = sadd.s32 %s165, %s163
        %s167 = smul.addr %s166, 4
        %s168 = scalar_lea.vmem %s0, %s167
      $region20: #{transformer_forward.10} parent=15 // pred_fallthru
        _
      // Predicated region
      $region21: #{transformer_forward.10} parent=15 // pred_check
        %p169 = pneg %p78
      $region22: #{transformer_forward.10} parent=15 // pred_check_branch
        %171 = sbr.rel (%p169) target = $region24
      $region23: #{transformer_forward.10} parent=15 // pred_region
        %p172 = scmp.lt.s32.totalorder %s16, 7
        %s173 = scalar_select %p172, %s16, 7
        %p174 = scmp.lt.s32.totalorder %s18, 0
        %s175 = scalar_select %p174, %s18, 0
        %s176 = sadd.s32 %s175, %s173
        %s177 = smul.addr %s176, 4
        %s178 = scalar_lea.vmem %s1, %s177
      $region24: #{transformer_forward.10} parent=15 // pred_fallthru
        _
      // Predicated region
      $region25: #{transformer_forward.10} parent=15 // pred_check
        %p179 = pneg %p106
      $region26: #{transformer_forward.10} parent=15 // pred_check_branch
        %181 = sbr.rel (%p179) target = $region28
      $region27: #{transformer_forward.10} parent=15 // pred_region
        %p182 = scmp.lt.s32.totalorder %s16, 7
        %s183 = scalar_select %p182, %s16, 7
        %p184 = scmp.lt.s32.totalorder %s18, 0
        %s185 = scalar_select %p184, %s18, 0
        %s186 = sadd.s32 %s185, %s183
        %s187 = smul.addr %s186, 4
        %s188 = scalar_lea.vmem %s2, %s187
      $region28: #{transformer_forward.10} parent=15 // pred_fallthru
        _
    $region16: #{transformer_forward.10} parent=5 // pred_fallthru
      _
    %p189 = scmp.le.s32.totalorder 1, %s9
    %p190 = scmp.lt.s32.totalorder %s9, 9
    %p191 = pnand %p189, %p190
    %p192 = pneg %p191
    // Predicated region
    $region29: #{transformer_forward.10} parent=5 // pred_check
      _
    $region30: #{transformer_forward.10} parent=5 // pred_check_branch
      %194 = sbr.rel (%p191) target = $region32
    $region31: #{transformer_forward.10} parent=5 // pred_region
      %s195 = ssub.s32 %s9, 1
      %p196 = scmp.lt.s32.totalorder %s19, 7
      %s197 = scalar_select %p196, %s19, 7
      %p198 = scmp.lt.s32.totalorder %s20, 0
      %s199 = scalar_select %p198, %s20, 0
      %s200 = sadd.s32 %s199, %s197
      %s201 = smul.addr %s200, 4
      %s202 = scalar_lea.vmem %s0, %s201
      %p203 = pneg %p56
      %p204 = pneg %p53
      %p205 = scmp.lt.s32.totalorder %s19, 7
      %s206 = scalar_select %p205, %s19, 7
      %p207 = scmp.lt.s32.totalorder %s21, 0
      %s208 = scalar_select %p207, %s21, 0
      %s209 = sadd.s32 %s208, %s206
      %s210 = smul.addr %s209, 4
      %s211 = scalar_lea.vmem %s1, %s210
      %p212 = pneg %p84
      %p213 = pneg %p81
      %p214 = scmp.lt.s32.totalorder %s19, 7
      %s215 = scalar_select %p214, %s19, 7
      %p216 = scmp.lt.s32.totalorder %s21, 0
      %s217 = scalar_select %p216, %s21, 0
      %s218 = sadd.s32 %s217, %s215
      %s219 = smul.addr %s218, 4
      %s220 = scalar_lea.vmem %s2, %s219
      %p221 = pneg %p112
      %p222 = pneg %p109
      %p223 = pneg %p140
      %p224 = pneg %p137
      %p225 = scmp.lt.s32.totalorder %s19, 7
      %s226 = scalar_select %p225, %s19, 7
      %p227 = scmp.lt.s32.totalorder %s20, 0
      %s228 = scalar_select %p227, %s20, 0
      %s229 = sadd.s32 %s228, %s226
      %s230 = smul.addr %s229, 4
      %s231 = scalar_lea.vmem %s3, %s230
      %p232 = scmp.lt.s32.totalorder %s19, 7
      %s233 = scalar_select %p232, %s19, 7
      %p234 = scmp.lt.s32.totalorder %s20, 0
      %s235 = scalar_select %p234, %s20, 0
      %s236 = sadd.s32 %s235, %s233
      %s237 = smul.addr %s236, 4
      %s238 = scalar_lea.vmem %s0, %s237
      %p239 = scmp.lt.s32.totalorder %s19, 7
      %s240 = scalar_select %p239, %s19, 7
      %p241 = scmp.lt.s32.totalorder %s21, 0
      %s242 = scalar_select %p241, %s21, 0
      %s243 = sadd.s32 %s242, %s240
      %s244 = smul.addr %s243, 4
      %s245 = scalar_lea.vmem %s1, %s244
      %p246 = scmp.lt.s32.totalorder %s19, 7
      %s247 = scalar_select %p246, %s19, 7
      %p248 = scmp.lt.s32.totalorder %s21, 0
      %s249 = scalar_select %p248, %s21, 0
      %s250 = sadd.s32 %s249, %s247
      %s251 = smul.addr %s250, 4
      %s252 = scalar_lea.vmem %s2, %s251
      %p253 = scmp.lt.s32.totalorder %s19, 7
      %s254 = scalar_select %p253, %s19, 7
      %p255 = scmp.lt.s32.totalorder %s20, 0
      %s256 = scalar_select %p255, %s20, 0
      %s257 = sadd.s32 %s256, %s254
      %s258 = smul.addr %s257, 4
      %s259 = scalar_lea.vmem %s3, %s258
      %p261 = scmp.eq.s32.totalorder %s21, 0
      // Predicated region
      $region33: #{transformer_forward.10} parent=31 // pred_check
        %p262 = pneg %p261
      $region34: #{transformer_forward.10} parent=31 // pred_check_branch
        %264 = sbr.rel (%p262) target = $region36
      $region35: #{transformer_forward.10} parent=31 // pred_region
        %vm265 = vcmask 7168
        %266 = vst.msk [vmem:[#allocation2] sm:$0xff] %vm265, -1e+30
        %267 = vst.msk [vmem:[#allocation3] sm:$0xff] %vm265, 0.0
        %vm268 = vcmask 64512
        %269 = vst.msk [vmem:[#allocation4] sm:$0xff] %vm268, 0.0
      $region36: #{transformer_forward.10} parent=31 // pred_fallthru
        _
      %s270 = smul.u32 %s20, 8
      %s271 = smul.u32 %s21, 8
      %s272 = sadd.s32 %s270, 7
      %p273 = scmp.le.s32.totalorder %s271, %s272
      // Predicated region
      $region37: #{transformer_forward.10} parent=31 // pred_check
        %p274 = pneg %p273
      $region38: #{transformer_forward.10} parent=31 // pred_check_branch
        %276 = sbr.rel (%p274) target = $region40
      $region39: #{transformer_forward.10} parent=31 // pred_region
        %v277 = vld [vmem:[%s238] sm:$0xf]
        %v278 = vld [vmem:[%s245] sm:$0xf]
        %v279 = vld [vmem:[%s252] sm:$0xf]
        %vm280 = vcmask 64512
        %v282 = vsel %vm280, %v277, 0
        %v285 = vsel %vm280, %v278, 0
        %287 = vmatpush.bf16.xpose.msra.mxu0 0
        %288 = vmatpush.bf16.xpose.msra.mxu0 0
        %289 = vmatpush.bf16.xpose.msra.mxu0 0
        %290 = vmatpush.bf16.xpose.msra.mxu0 0
        %291 = vmatpush.bf16.xpose.msra.mxu0 0
        %292 = vmatpush.bf16.xpose.msra.mxu0 0
        %293 = vmatpush.bf16.xpose.msra.mxu0 0
        %294 = vmatpush.bf16.xpose.msra.mxu0 %v285
        %295 = vmatmul.bf16.gmra.mxu0 %v282
        %v296 = vpop.f32.mrf.mxu0
        %v297 = vadd.f32 0.0, %v296
        %v298 = vpop.f32.mrf.mxu0
        %299 = vdwg.mxu0
        %v300 = vmul.f32 %v297, 0.35355338
        %v301 = vlaneseq
        %v302 = vshrl.u32 %v301, 7
        %v303 = vstv %s270
        %v304 = vadd.s32 %v303, %v302
        %v305 = vlaneseq
        %v306 = vand.u32 %v305, 127
        %v307 = vstv %s271
        %v308 = vadd.s32 %v307, %v306
        %vm309 = vcmp.gt.s32.totalorder %v308, %v304
        %v310 = vsel %vm309, -1e+30, %v300
        %v311 = vld [vmem:[#allocation2] sm:$0xff]
        %v312 = vsel %vm280, %v310, -inf
        %313 = vmax.xlane.f32.xlu0 %v312
        %v314 = vpop.xlane.xlu0 %313
        %v315 = vmax.f32 %v311, %v314
        %v316 = vsub.f32 %v311, %v315
        %v317 = vmul.f32 %v316, 1.442695
        %v318 = vpow.pop %v317
        %320 = vset.pattern.permute.xlu0 0
        %321 = vperm.xlu0 %320, %v315
        %v322 = vpop.permute.xlu0 %321
        %v324 = vsub.f32 %v310, %v322
        %v325 = vmul.f32 %v324, 1.442695
        %v326 = vpow.pop %v325
        %v327 = vld [vmem:[#allocation3] sm:$0xff]
        %v328 = vmul.f32 %v318, %v327
        %v329 = vsel %vm280, %v326, 0.0
        %330 = vadd.xlane.f32.xlu0 %v329
        %v331 = vpop.xlane.xlu0 %330
        %v332 = vadd.f32 %v328, %v331
        %vm333 = vcmask 7168
        %334 = vst.msk [vmem:[#allocation3] sm:$0xff] %vm333, %v332
        %v335 = vld [vmem:[#allocation4] sm:$0xff]
        %337 = vset.pattern.permute.xlu0 0
        %338 = vperm.xlu0 %337, %v318
        %v339 = vpop.permute.xlu0 %338
        %v341 = vmul.f32 %v339, %v335
        %v342 = vpack.c.bf16 %v326, %v326
        %v344 = vsel %vm280, %v342, 0
        %vm346 = vcmask 1043456
        %v348 = vsel %vm346, %v279, 0
        %350 = vmatpush.bf16.msra.mxu0 0
        %351 = vmatpush.bf16.msra.mxu0 0
        %352 = vmatpush.bf16.msra.mxu0 0
        %353 = vmatpush.bf16.msra.mxu0 0
        %354 = vmatpush.bf16.msra.mxu0 0
        %355 = vmatpush.bf16.msra.mxu0 0
        %356 = vmatpush.bf16.msra.mxu0 0
        %357 = vmatpush.bf16.msra.mxu0 %v348
        %358 = vmatmul.bf16.gmra.mxu0 %v344
        %v359 = vpop.f32.mrf.mxu0
        %v360 = vadd.f32 0.0, %v359
        %v361 = vpop.f32.mrf.mxu0
        %362 = vdwg.mxu0
        %v363 = vadd.f32 %v341, %v360
        %364 = vst.msk [vmem:[#allocation4] sm:$0xff] %vm280, %v363
        %365 = vst.msk [vmem:[#allocation2] sm:$0xff] %vm333, %v315
      $region40: #{transformer_forward.10} parent=31 // pred_fallthru
        _
      // Predicated region
      $region41: #{transformer_forward.10} parent=31 // pred_check
        %p366 = pneg %p261
      $region42: #{transformer_forward.10} parent=31 // pred_check_branch
        %368 = sbr.rel (%p366) target = $region44
      $region43: #{transformer_forward.10} parent=31 // pred_region
        %v369 = vld [vmem:[#allocation4] sm:$0xff]
        %v370 = vld [vmem:[#allocation3] sm:$0xff]
        %v371 = vrcp.pop %v370
        %373 = vset.pattern.permute.xlu0 0
        %374 = vperm.xlu0 %373, %v371
        %v375 = vpop.permute.xlu0 %374
        %v377 = vmul.f32 %v369, %v375
        %v378 = vpack.c.bf16 %v377, %v377
        %vm379 = vcmask 60416
        %380 = vst.msk [vmem:[%s259] sm:$0xf] %vm379, %v378
      $region44: #{transformer_forward.10} parent=31 // pred_fallthru
        _
      %p381 = scmp.lt.s32.totalorder %s19, 7
      %s382 = scalar_select %p381, %s19, 7
      %p383 = scmp.lt.s32.totalorder %s20, 0
      %s384 = scalar_select %p383, %s20, 0
      %s385 = sadd.s32 %s384, %s382
      %s386 = smul.addr %s385, 4
      %s387 = scalar_lea.vmem %s3, %s386
      // Predicated region
      $region45: #{transformer_forward.10} parent=31 // pred_check
        %p388 = pneg %p137
      $region46: #{transformer_forward.10} parent=31 // pred_check_branch
        %390 = sbr.rel (%p388) target = $region48
      $region47: #{transformer_forward.10} parent=31 // pred_region
        _
      $region48: #{transformer_forward.10} parent=31 // pred_fallthru
        _
    $region32: #{transformer_forward.10} parent=5 // pred_fallthru
      _
    %p391 = scmp.le.s32.totalorder 2, %s9
    // Predicated region
    $region49: #{transformer_forward.10} parent=5 // pred_check
      %p392 = pneg %p391
    $region50: #{transformer_forward.10} parent=5 // pred_check_branch
      %394 = sbr.rel (%p392) target = $region52
    $region51: #{transformer_forward.10} parent=5 // pred_region
      %s395 = ssub.s32 %s9, 2
      // Predicated region
      $region53: #{transformer_forward.10} parent=51 // pred_check
        %p396 = pneg %p143
      $region54: #{transformer_forward.10} parent=51 // pred_check_branch
        %398 = sbr.rel (%p396) target = $region56
      $region55: #{transformer_forward.10} parent=51 // pred_region
        %p399 = scmp.lt.s32.totalorder %s22, 7
        %s400 = scalar_select %p399, %s22, 7
        %p401 = scmp.lt.s32.totalorder %s23, 0
        %s402 = scalar_select %p401, %s23, 0
        %s403 = sadd.s32 %s402, %s400
        %s404 = smul.addr %s403, 4
        %s405 = scalar_lea.vmem %s3, %s404
      $region56: #{transformer_forward.10} parent=51 // pred_fallthru
        _
    $region52: #{transformer_forward.10} parent=5 // pred_fallthru
      _
  $region6: #{transformer_forward.10} parent=0 // loop_footer
    %s13 = sadd.s32 1, %s9
  $region7: #{transformer_forward.10} parent=0 // loop_footer_branch
    %8 = sbr.rel target = $region3
  $region8: #{transformer_forward.10} parent=0 // loop_exit
    _

// kernel: transformer_forward.11
$region0: #{transformer_forward.11}
  #allocation0 [shape = 'u32[]', space=smem, size = 0x4, offset = 0x4, fixed_abs, tag = 'smem constant byte address 0x4 - core index']
  #allocation1 [shape = 'u32[72,128]{1,0:T(1,128)}', space=vmem, size = 0x9000, scoped, tag = 'internal scratch']
  #allocation2 [shape = 'f32[16,32]{1,0:T(8,128)}', space=vmem, size = 0x2000, scoped, tag = 'scratch operand']
  %s0 = inlined_call_operand.vmem [shape: bf16[16,32], index: 0, kind: input, shape index: {}]
  %s1 = inlined_call_operand.vmem [shape: bf16[32,32], index: 1, kind: input, shape index: {}]
  %s2 = inlined_call_operand.vmem [shape: f32[16,32], index: 2, kind: output, shape index: {}]
  %s3 = sld [smem:[#allocation0]]
  $region26: #{transformer_forward.11} parent=0
    _
  %s5 = ssub.s32 1, %s3
  %s6 = scalar_select 0, %s5, %s3
  // Predicated region
  $region2: #{transformer_forward.11} parent=0 // pred_check
    _
  $region3: #{transformer_forward.11} parent=0 // pred_check_branch
    %8 = sbr.rel (0) target = $region5
  $region4: #{transformer_forward.11} parent=0 // pred_region
    _
  $region5: #{transformer_forward.11} parent=0 // pred_fallthru
    _
  // Predicated region
  $region6: #{transformer_forward.11} parent=0 // pred_check
    _
  $region7: #{transformer_forward.11} parent=0 // pred_check_branch
    %10 = sbr.rel (0) target = $region9
  $region8: #{transformer_forward.11} parent=0 // pred_region
    _
  $region9: #{transformer_forward.11} parent=0 // pred_fallthru
    _
  %p12 = scmp.eq.s32.totalorder 0, 0
  // Predicated region
  $region10: #{transformer_forward.11} parent=0 // pred_check
    %p13 = pneg %p12
  $region11: #{transformer_forward.11} parent=0 // pred_check_branch
    %15 = sbr.rel (%p13) target = $region13
  $region12: #{transformer_forward.11} parent=0 // pred_region
    %vm16 = vcmask 261120
    %17 = vst.msk [vmem:[#allocation2] sm:$0xff] %vm16, 0.0
    %18 = vst.msk [vmem:[#allocation2 + $0x8] sm:$0xff] %vm16, 0.0
  $region13: #{transformer_forward.11} parent=0 // pred_fallthru
    _
  %v19 = vld [vmem:[#allocation2] sm:$0xff]
  %v20 = vld [vmem:[#allocation2 + $0x8] sm:$0xff]
  %v21 = vld [vmem:[%s0] sm:$0xf]
  %v22 = vld [vmem:[%s0 + $0x4] sm:$0xf]
  %v23 = vld [vmem:[%s1] sm:$0xf]
  %v24 = vld [vmem:[%s1 + $0x4] sm:$0xf]
  %v25 = vld [vmem:[%s1 + $0x8] sm:$0xf]
  %v26 = vld [vmem:[%s1 + $0xc] sm:$0xf]
  %v29 = vunpack.c.l.b16 %v21
  %v30 = vunpack.c.l.b16 %v22
  %v31 = vpack.c.b16 %v30, %v29
  %v36 = vunpack.c.l.b16 %v23
  %v37 = vunpack.c.l.b16 %v24
  %v38 = vunpack.c.l.b16 %v25
  %v39 = vunpack.c.l.b16 %v26
  %v40 = vpack.c.b16 %v37, %v36
  %v41 = vpack.c.b16 %v39, %v38
  %vm44 = vcmask 261120
  %v46 = vsel %vm44, %v31, 0
  %48 = vmatpush.bf16.msra.mxu0 0
  %49 = vmatpush.bf16.msra.mxu0 0
  %50 = vmatpush.bf16.msra.mxu0 0
  %51 = vmatpush.bf16.msra.mxu0 0
  %52 = vmatpush.bf16.msra.mxu0 0
  %53 = vmatpush.bf16.msra.mxu0 0
  %54 = vmatpush.bf16.msra.mxu0 %v41
  %55 = vmatpush.bf16.msra.mxu0 %v40
  %56 = vmatmul.bf16.gmra.mxu0 %v46
  %v57 = vpop.f32.mrf.mxu0
  %v58 = vadd.f32 0.0, %v57
  %v59 = vpop.f32.mrf.mxu0
  %v60 = vadd.f32 0.0, %v59
  %61 = vdwg.mxu0
  %v62 = vadd.f32 %v19, %v58
  %v63 = vadd.f32 %v20, %v60
  %64 = vst.msk [vmem:[#allocation2] sm:$0xff] %vm44, %v62
  %65 = vst.msk [vmem:[#allocation2 + $0x8] sm:$0xff] %vm44, %v63
  // Predicated region
  $region14: #{transformer_forward.11} parent=0 // pred_check
    %p66 = pneg %p12
  $region15: #{transformer_forward.11} parent=0 // pred_check_branch
    %68 = sbr.rel (%p66) target = $region17
  $region16: #{transformer_forward.11} parent=0 // pred_region
    %v69 = vld [vmem:[#allocation2] sm:$0xff]
    %v70 = vld [vmem:[#allocation2 + $0x8] sm:$0xff]
    %71 = vst.msk [vmem:[%s2] sm:$0xff] %vm44, %v69
    %72 = vst.msk [vmem:[%s2 + $0x8] sm:$0xff] %vm44, %v70
  $region17: #{transformer_forward.11} parent=0 // pred_fallthru
    _
  // Predicated region
  $region18: #{transformer_forward.11} parent=0 // pred_check
    _
  $region19: #{transformer_forward.11} parent=0 // pred_check_branch
    %74 = sbr.rel (0) target = $region21
  $region20: #{transformer_forward.11} parent=0 // pred_region
    _
  $region21: #{transformer_forward.11} parent=0 // pred_fallthru
    _
  // Predicated region
  $region22: #{transformer_forward.11} parent=0 // pred_check
    _
  $region23: #{transformer_forward.11} parent=0 // pred_check_branch
    %76 = sbr.rel (0) target = $region25
  $region24: #{transformer_forward.11} parent=0 // pred_region
    _
  $region25: #{transformer_forward.11} parent=0 // pred_fallthru
    _

// kernel: transformer_forward.12
$region0: #{transformer_forward.12}
  #allocation0 [shape = 'u32[]', space=smem, size = 0x4, offset = 0x4, fixed_abs, tag = 'smem constant byte address 0x4 - core index']
  #allocation1 [shape = 'u32[72,128]{1,0:T(1,128)}', space=vmem, size = 0x9000, scoped, tag = 'internal scratch']
  #allocation2 [shape = 'bf16[16,32]{1,0:T(8,128)(2,1)}', space=vmem, size = 0x1000, scoped, tag = 'scratch operand']
  #allocation3 [shape = 'f32[16,32]{1,0:T(8,128)}', space=vmem, size = 0x2000, scoped, tag = 'scratch operand']
  %s0 = inlined_call_operand.vmem [shape: f32[16,32], index: 0, kind: input, shape index: {}]
  %s1 = inlined_call_operand.vmem [shape: f32[1,32], index: 1, kind: input, shape index: {}]
  %s2 = inlined_call_operand.vmem [shape: bf16[32,96], index: 2, kind: input, shape index: {}]
  %s3 = inlined_call_operand.vmem [shape: bf16[32,96], index: 3, kind: input, shape index: {}]
  %s4 = inlined_call_operand.vmem [shape: bf16[96,32], index: 4, kind: input, shape index: {}]
  %s5 = inlined_call_operand.vmem [shape: f32[16,32], index: 5, kind: output, shape index: {}]
  %s6 = sld [smem:[#allocation0]]
  $region38: #{transformer_forward.12} parent=0
    _
  %s8 = ssub.s32 1, %s6
  %s9 = scalar_select 0, %s8, %s6
  // Predicated region
  $region2: #{transformer_forward.12} parent=0 // pred_check
    _
  $region3: #{transformer_forward.12} parent=0 // pred_check_branch
    %11 = sbr.rel (0) target = $region5
  $region4: #{transformer_forward.12} parent=0 // pred_region
    _
  $region5: #{transformer_forward.12} parent=0 // pred_fallthru
    _
  // Predicated region
  $region6: #{transformer_forward.12} parent=0 // pred_check
    _
  $region7: #{transformer_forward.12} parent=0 // pred_check_branch
    %13 = sbr.rel (0) target = $region9
  $region8: #{transformer_forward.12} parent=0 // pred_region
    _
  $region9: #{transformer_forward.12} parent=0 // pred_fallthru
    _
  // Predicated region
  $region10: #{transformer_forward.12} parent=0 // pred_check
    _
  $region11: #{transformer_forward.12} parent=0 // pred_check_branch
    %15 = sbr.rel (0) target = $region13
  $region12: #{transformer_forward.12} parent=0 // pred_region
    _
  $region13: #{transformer_forward.12} parent=0 // pred_fallthru
    _
  // Predicated region
  $region14: #{transformer_forward.12} parent=0 // pred_check
    _
  $region15: #{transformer_forward.12} parent=0 // pred_check_branch
    %17 = sbr.rel (0) target = $region17
  $region16: #{transformer_forward.12} parent=0 // pred_region
    _
  $region17: #{transformer_forward.12} parent=0 // pred_fallthru
    _
  // Predicated region
  $region18: #{transformer_forward.12} parent=0 // pred_check
    _
  $region19: #{transformer_forward.12} parent=0 // pred_check_branch
    %19 = sbr.rel (0) target = $region21
  $region20: #{transformer_forward.12} parent=0 // pred_region
    _
  $region21: #{transformer_forward.12} parent=0 // pred_fallthru
    _
  %p21 = scmp.eq.s32.totalorder 0, 0
  // Predicated region
  $region22: #{transformer_forward.12} parent=0 // pred_check
    %p22 = pneg %p21
  $region23: #{transformer_forward.12} parent=0 // pred_check_branch
    %24 = sbr.rel (%p22) target = $region25
  $region24: #{transformer_forward.12} parent=0 // pred_region
    %v25 = vld [vmem:[%s0] sm:$0xff]
    %v26 = vld [vmem:[%s0 + $0x8] sm:$0xff]
    %v27 = vmul.f32 %v25, %v25
    %v28 = vmul.f32 %v26, %v26
    %vm29 = vcmask 261120
    %v30 = vsel %vm29, %v27, 0.0
    %31 = vadd.xlane.f32.xlu0 %v30
    %v32 = vpop.xlane.xlu0 %31
    %v33 = vsel %vm29, %v28, 0.0
    %34 = vadd.xlane.f32.xlu0 %v33
    %v35 = vpop.xlane.xlu0 %34
    %v36 = vrcp.pop 32.0
    %v37 = vmul.f32 32.0, %v36
    %v38 = vsub.f32 1.0, %v37
    %v39 = vmul.f32 %v36, %v38
    %v40 = vadd.f32 %v36, %v39
    %vm41 = vweird.f32 %v36
    %v42 = vsel %vm41, %v36, %v40
    %v43 = vmul.f32 %v32, %v42
    %v44 = vmul.f32 %v35, %v42
    %v45 = vadd.f32 %v43, 1e-05
    %v46 = vadd.f32 %v44, 1e-05
    %v47 = vrsqrt.pop %v45
    %v48 = vmul.f32 %v47, %v45
    %v49 = vmul.f32 %v48, %v47
    %v50 = vmul.f32 0.5, %v49
    %v51 = vsub.f32 1.5, %v50
    %v52 = vmul.f32 %v47, %v51
    %vm53 = vweird.f32 %v45
    %vm54 = vweird.f32 %v47
    %vm55 = vmor %vm53, %vm54
    %v56 = vsel %vm55, %v47, %v52
    %v57 = vrsqrt.pop %v46
    %v58 = vmul.f32 %v57, %v46
    %v59 = vmul.f32 %v58, %v57
    %v60 = vmul.f32 0.5, %v59
    %v61 = vsub.f32 1.5, %v60
    %v62 = vmul.f32 %v57, %v61
    %vm63 = vweird.f32 %v46
    %vm64 = vweird.f32 %v57
    %vm65 = vmor %vm63, %vm64
    %v66 = vsel %vm65, %v57, %v62
    %v67 = vmul.f32 %v25, %v56
    %v68 = vmul.f32 %v26, %v66
    %v69 = vld [vmem:[%s1] sm:$0x1]
    %v71 = vperm.slane %v69, 0
    %v73 = vmul.f32 %v67, %v71
    %v74 = vmul.f32 %v68, %v71
    %v75 = vpack.c.bf16 %v73, %v73
    %v76 = vpack.c.bf16 %v74, %v74
    %vm77 = vcmask 257024
    %78 = vst.msk [vmem:[#allocation2] sm:$0xf] %vm77, %v75
    %79 = vst.msk [vmem:[#allocation2 + $0x4] sm:$0xf] %vm77, %v76
    %80 = vst.msk [vmem:[#allocation3] sm:$0xff] %vm29, 0.0
    %81 = vst.msk [vmem:[#allocation3 + $0x8] sm:$0xff] %vm29, 0.0
  $region25: #{transformer_forward.12} parent=0 // pred_fallthru
    _
  %v82 = vld [vmem:[#allocation2] sm:$0xf]
  %v83 = vld [vmem:[#allocation2 + $0x4] sm:$0xf]
  %v84 = vld [vmem:[%s2] sm:$0xf]
  %v85 = vld [vmem:[%s2 + $0x4] sm:$0xf]
  %v86 = vld [vmem:[%s2 + $0x8] sm:$0xf]
  %v87 = vld [vmem:[%s2 + $0xc] sm:$0xf]
  %v90 = vunpack.c.l.b16 %v82
  %v91 = vunpack.c.l.b16 %v83
  %v92 = vpack.c.b16 %v91, %v90
  %v97 = vunpack.c.l.b16 %v84
  %v98 = vunpack.c.l.b16 %v85
  %v99 = vunpack.c.l.b16 %v86
  %v100 = vunpack.c.l.b16 %v87
  %v101 = vpack.c.b16 %v98, %v97
  %v102 = vpack.c.b16 %v100, %v99
  %vm105 = vcmask 261120
  %v107 = vsel %vm105, %v92, 0
  %109 = vmatpush.bf16.msra.mxu0 0
  %110 = vmatpush.bf16.msra.mxu0 0
  %111 = vmatpush.bf16.msra.mxu0 0
  %112 = vmatpush.bf16.msra.mxu0 0
  %113 = vmatpush.bf16.msra.mxu0 0
  %114 = vmatpush.bf16.msra.mxu0 0
  %115 = vmatpush.bf16.msra.mxu0 %v102
  %116 = vmatpush.bf16.msra.mxu0 %v101
  %117 = vmatmul.bf16.gmra.mxu0 %v107
  %v118 = vpop.f32.mrf.mxu0
  %v119 = vadd.f32 0.0, %v118
  %v120 = vpop.f32.mrf.mxu0
  %v121 = vadd.f32 0.0, %v120
  %122 = vdwg.mxu0
  %v123 = vld [vmem:[%s3] sm:$0xf]
  %v124 = vld [vmem:[%s3 + $0x4] sm:$0xf]
  %v125 = vld [vmem:[%s3 + $0x8] sm:$0xf]
  %v126 = vld [vmem:[%s3 + $0xc] sm:$0xf]
  %v131 = vunpack.c.l.b16 %v123
  %v132 = vunpack.c.l.b16 %v124
  %v133 = vunpack.c.l.b16 %v125
  %v134 = vunpack.c.l.b16 %v126
  %v135 = vpack.c.b16 %v132, %v131
  %v136 = vpack.c.b16 %v134, %v133
  %139 = vmatpush.bf16.msra.mxu0 0
  %140 = vmatpush.bf16.msra.mxu0 0
  %141 = vmatpush.bf16.msra.mxu0 0
  %142 = vmatpush.bf16.msra.mxu0 0
  %143 = vmatpush.bf16.msra.mxu0 0
  %144 = vmatpush.bf16.msra.mxu0 0
  %145 = vmatpush.bf16.msra.mxu0 %v136
  %146 = vmatpush.bf16.msra.mxu0 %v135
  %147 = vmatmul.bf16.gmra.mxu0 %v107
  %v148 = vpop.f32.mrf.mxu0
  %v149 = vadd.f32 0.0, %v148
  %v150 = vpop.f32.mrf.mxu0
  %v151 = vadd.f32 0.0, %v150
  %152 = vdwg.mxu0
  %v153 = vxor.u32 %v119, 2147483648
  %v154 = vxor.u32 %v121, 2147483648
  %v155 = vmul.f32 %v153, 1.442695
  %v156 = vpow.pop %v155
  %v157 = vmul.f32 %v154, 1.442695
  %v158 = vpow.pop %v157
  %v159 = vadd.f32 %v156, 1.0
  %v160 = vadd.f32 %v158, 1.0
  %v161 = vrcp.pop %v159
  %v162 = vmul.f32 %v159, %v161
  %v163 = vsub.f32 1.0, %v162
  %v164 = vmul.f32 %v161, %v163
  %v165 = vadd.f32 %v161, %v164
  %vm166 = vweird.f32 %v159
  %vm167 = vweird.f32 %v161
  %vm168 = vmor %vm166, %vm167
  %v169 = vsel %vm168, %v161, %v165
  %v170 = vand.u32 2147483647, %v159
  %vm171 = vcmp.eq.f32.partialorder %v170, 8.507059e+37
  %v172 = vand.u32 %v159, 2147483648
  %v173 = vor.u32 1.1754944e-38, %v172
  %v174 = vsel %vm171, %v173, %v169
  %v175 = vmul.f32 1.0, %v174
  %v176 = vrcp.pop %v160
  %v177 = vmul.f32 %v160, %v176
  %v178 = vsub.f32 1.0, %v177
  %v179 = vmul.f32 %v176, %v178
  %v180 = vadd.f32 %v176, %v179
  %vm181 = vweird.f32 %v160
  %vm182 = vweird.f32 %v176
  %vm183 = vmor %vm181, %vm182
  %v184 = vsel %vm183, %v176, %v180
  %v185 = vand.u32 2147483647, %v160
  %vm186 = vcmp.eq.f32.partialorder %v185, 8.507059e+37
  %v187 = vand.u32 %v160, 2147483648
  %v188 = vor.u32 1.1754944e-38, %v187
  %v189 = vsel %vm186, %v188, %v184
  %v190 = vmul.f32 1.0, %v189
  %v191 = vmul.f32 %v119, %v175
  %v192 = vmul.f32 %v121, %v190
  %v193 = vmul.f32 %v191, %v149
  %v194 = vmul.f32 %v192, %v151
  %v195 = vpack.c.bf16 %v194, %v193
  %v196 = vld [vmem:[#allocation3] sm:$0xff]
  %v197 = vld [vmem:[#allocation3 + $0x8] sm:$0xff]
  %v198 = vld [vmem:[%s4] sm:$0xf]
  %v199 = vld [vmem:[%s4 + $0x4] sm:$0xf]
  %v200 = vld [vmem:[%s4 + $0x8] sm:$0xf]
  %v201 = vld [vmem:[%s4 + $0xc] sm:$0xf]
  %v202 = vld [vmem:[%s4 + $0x10] sm:$0xf]
  %v203 = vld [vmem:[%s4 + $0x14] sm:$0xf]
  %v204 = vld [vmem:[%s4 + $0x18] sm:$0xf]
  %v205 = vld [vmem:[%s4 + $0x1c] sm:$0xf]
  %v206 = vld [vmem:[%s4 + $0x20] sm:$0xf]
  %v207 = vld [vmem:[%s4 + $0x24] sm:$0xf]
  %v208 = vld [vmem:[%s4 + $0x28] sm:$0xf]
  %v209 = vld [vmem:[%s4 + $0x2c] sm:$0xf]
  %v222 = vunpack.c.l.b16 %v198
  %v223 = vunpack.c.l.b16 %v199
  %v224 = vunpack.c.l.b16 %v200
  %v225 = vunpack.c.l.b16 %v201
  %v226 = vunpack.c.l.b16 %v202
  %v227 = vunpack.c.l.b16 %v203
  %v228 = vunpack.c.l.b16 %v204
  %v229 = vunpack.c.l.b16 %v205
  %v230 = vunpack.c.l.b16 %v206
  %v231 = vunpack.c.l.b16 %v207
  %v232 = vunpack.c.l.b16 %v208
  %v233 = vunpack.c.l.b16 %v209
  %v234 = vpack.c.b16 %v223, %v222
  %v235 = vpack.c.b16 %v225, %v224
  %v236 = vpack.c.b16 %v227, %v226
  %v237 = vpack.c.b16 %v229, %v228
  %v238 = vpack.c.b16 %v231, %v230
  %v239 = vpack.c.b16 %v233, %v232
  %vm246 = vcmask 785408
  %v248 = vsel %vm246, %v195, 0
  %250 = vmatpush.bf16.msra.mxu0 0
  %251 = vmatpush.bf16.msra.mxu0 0
  %252 = vmatpush.bf16.msra.mxu0 %v239
  %253 = vmatpush.bf16.msra.mxu0 %v238
  %254 = vmatpush.bf16.msra.mxu0 %v237
  %255 = vmatpush.bf16.msra.mxu0 %v236
  %256 = vmatpush.bf16.msra.mxu0 %v235
  %257 = vmatpush.bf16.msra.mxu0 %v234
  %258 = vmatmul.bf16.gmra.mxu0 %v248
  %v259 = vpop.f32.mrf.mxu0
  %v260 = vadd.f32 0.0, %v259
  %v261 = vpop.f32.mrf.mxu0
  %v262 = vadd.f32 0.0, %v261
  %263 = vdwg.mxu0
  %v264 = vadd.f32 %v196, %v260
  %v265 = vadd.f32 %v197, %v262
  %266 = vst.msk [vmem:[#allocation3] sm:$0xff] %vm105, %v264
  %267 = vst.msk [vmem:[#allocation3 + $0x8] sm:$0xff] %vm105, %v265
  // Predicated region
  $region26: #{transformer_forward.12} parent=0 // pred_check
    %p268 = pneg %p21
  $region27: #{transformer_forward.12} parent=0 // pred_check_branch
    %270 = sbr.rel (%p268) target = $region29
  $region28: #{transformer_forward.12} parent=0 // pred_region
    %v271 = vld [vmem:[#allocation3] sm:$0xff]
    %v272 = vld [vmem:[#allocation3 + $0x8] sm:$0xff]
    %273 = vst.msk [vmem:[%s5] sm:$0xff] %vm105, %v271
    %274 = vst.msk [vmem:[%s5 + $0x8] sm:$0xff] %vm105, %v272
  $region29: #{transformer_forward.12} parent=0 // pred_fallthru
    _
  // Predicated region
  $region30: #{transformer_forward.12} parent=0 // pred_check
    _
  $region31: #{transformer_forward.12} parent=0 // pred_check_branch
    %276 = sbr.rel (0) target = $region33
  $region32: #{transformer_forward.12} parent=0 // pred_region
    _
  $region33: #{transformer_forward.12} parent=0 // pred_fallthru
    _
  // Predicated region
  $region34: #{transformer_forward.12} parent=0 // pred_check
    _
  $region35: #{transformer_forward.12} parent=0 // pred_check_branch
    %278 = sbr.rel (0) target = $region37
  $region36: #{transformer_forward.12} parent=0 // pred_region
    _
  $region37: #{transformer_forward.12} parent=0 // pred_fallthru
    _

// kernel: transformer_forward.17
$region0: #{transformer_forward.17}
  #allocation0 [shape = 'u32[]', space=smem, size = 0x4, offset = 0x4, fixed_abs, tag = 'smem constant byte address 0x4 - core index']
  #allocation1 [shape = 'u32[72,128]{1,0:T(1,128)}', space=vmem, size = 0x9000, scoped, tag = 'internal scratch']
  #allocation2 [shape = 'bf16[16,32]{1,0:T(8,128)(2,1)}', space=vmem, size = 0x1000, scoped, tag = 'scratch operand']
  %s0 = inlined_call_operand.vmem [shape: f32[16,32], index: 0, kind: input, shape index: {}]
  %s1 = inlined_call_operand.vmem [shape: f32[1,32], index: 1, kind: input, shape index: {}]
  %s2 = inlined_call_operand.vmem [shape: bf16[32,64], index: 2, kind: input, shape index: {}]
  %s3 = inlined_call_operand.hbm [shape: f32[16,64], index: 3, kind: output, shape index: {}]
  %s4 = sld [smem:[#allocation0]]
  $region26: #{transformer_forward.17} parent=0
    _
  %s6 = ssub.s32 1, %s4
  %s7 = scalar_select 0, %s6, %s4
  $region1: #{transformer_forward.17} parent=0
    #allocation3 [shape = 'u8[8192]{0}', space=vmem, size = 0x2000, scoped, tag = 'output window, operand 0, single buffered']
    #allocation4 [shape = 's32[1]{0}', space=sflag, size = 0x4, scoped, tag = 'scoped memory for transformer_forward.17']
    %8 = vsyncpa [#allocation4], 0
    // Predicated region
    $region2: #{transformer_forward.17} parent=1 // pred_check
      _
    $region3: #{transformer_forward.17} parent=1 // pred_check_branch
      %10 = sbr.rel (0) target = $region5
    $region4: #{transformer_forward.17} parent=1 // pred_region
      _
    $region5: #{transformer_forward.17} parent=1 // pred_fallthru
      _
    // Predicated region
    $region6: #{transformer_forward.17} parent=1 // pred_check
      _
    $region7: #{transformer_forward.17} parent=1 // pred_check_branch
      %12 = sbr.rel (0) target = $region9
    $region8: #{transformer_forward.17} parent=1 // pred_region
      _
    $region9: #{transformer_forward.17} parent=1 // pred_fallthru
      _
    // Predicated region
    $region10: #{transformer_forward.17} parent=1 // pred_check
      _
    $region11: #{transformer_forward.17} parent=1 // pred_check_branch
      %14 = sbr.rel (0) target = $region13
    $region12: #{transformer_forward.17} parent=1 // pred_region
      _
    $region13: #{transformer_forward.17} parent=1 // pred_fallthru
      _
    %p16 = scmp.eq.s32.totalorder 0, 0
    // Predicated region
    $region14: #{transformer_forward.17} parent=1 // pred_check
      %p17 = pneg %p16
    $region15: #{transformer_forward.17} parent=1 // pred_check_branch
      %19 = sbr.rel (%p17) target = $region17
    $region16: #{transformer_forward.17} parent=1 // pred_region
      %v20 = vld [vmem:[%s0] sm:$0xff]
      %v21 = vld [vmem:[%s0 + $0x8] sm:$0xff]
      %v22 = vmul.f32 %v20, %v20
      %v23 = vmul.f32 %v21, %v21
      %vm24 = vcmask 261120
      %v25 = vsel %vm24, %v22, 0.0
      %26 = vadd.xlane.f32.xlu0 %v25
      %v27 = vpop.xlane.xlu0 %26
      %v28 = vsel %vm24, %v23, 0.0
      %29 = vadd.xlane.f32.xlu0 %v28
      %v30 = vpop.xlane.xlu0 %29
      %v31 = vrcp.pop 32.0
      %v32 = vmul.f32 32.0, %v31
      %v33 = vsub.f32 1.0, %v32
      %v34 = vmul.f32 %v31, %v33
      %v35 = vadd.f32 %v31, %v34
      %vm36 = vweird.f32 %v31
      %v37 = vsel %vm36, %v31, %v35
      %v38 = vmul.f32 %v27, %v37
      %v39 = vmul.f32 %v30, %v37
      %v40 = vadd.f32 %v38, 1e-05
      %v41 = vadd.f32 %v39, 1e-05
      %v42 = vrsqrt.pop %v40
      %v43 = vmul.f32 %v42, %v40
      %v44 = vmul.f32 %v43, %v42
      %v45 = vmul.f32 0.5, %v44
      %v46 = vsub.f32 1.5, %v45
      %v47 = vmul.f32 %v42, %v46
      %vm48 = vweird.f32 %v40
      %vm49 = vweird.f32 %v42
      %vm50 = vmor %vm48, %vm49
      %v51 = vsel %vm50, %v42, %v47
      %v52 = vrsqrt.pop %v41
      %v53 = vmul.f32 %v52, %v41
      %v54 = vmul.f32 %v53, %v52
      %v55 = vmul.f32 0.5, %v54
      %v56 = vsub.f32 1.5, %v55
      %v57 = vmul.f32 %v52, %v56
      %vm58 = vweird.f32 %v41
      %vm59 = vweird.f32 %v52
      %vm60 = vmor %vm58, %vm59
      %v61 = vsel %vm60, %v52, %v57
      %v62 = vmul.f32 %v20, %v51
      %v63 = vmul.f32 %v21, %v61
      %v64 = vld [vmem:[%s1] sm:$0x1]
      %v66 = vperm.slane %v64, 0
      %v68 = vmul.f32 %v62, %v66
      %v69 = vmul.f32 %v63, %v66
      %v70 = vpack.c.bf16 %v68, %v68
      %v71 = vpack.c.bf16 %v69, %v69
      %vm72 = vcmask 257024
      %73 = vst.msk [vmem:[#allocation2] sm:$0xf] %vm72, %v70
      %74 = vst.msk [vmem:[#allocation2 + $0x4] sm:$0xf] %vm72, %v71
    $region17: #{transformer_forward.17} parent=1 // pred_fallthru
      _
    %v75 = vld [vmem:[#allocation2] sm:$0xf]
    %v76 = vld [vmem:[#allocation2 + $0x4] sm:$0xf]
    %v77 = vld [vmem:[%s2] sm:$0xf]
    %v78 = vld [vmem:[%s2 + $0x4] sm:$0xf]
    %v79 = vld [vmem:[%s2 + $0x8] sm:$0xf]
    %v80 = vld [vmem:[%s2 + $0xc] sm:$0xf]
    %v83 = vunpack.c.l.b16 %v75
    %v84 = vunpack.c.l.b16 %v76
    %v85 = vpack.c.b16 %v84, %v83
    %v90 = vunpack.c.l.b16 %v77
    %v91 = vunpack.c.l.b16 %v78
    %v92 = vunpack.c.l.b16 %v79
    %v93 = vunpack.c.l.b16 %v80
    %v94 = vpack.c.b16 %v91, %v90
    %v95 = vpack.c.b16 %v93, %v92
    %vm98 = vcmask 261120
    %v100 = vsel %vm98, %v85, 0
    %102 = vmatpush.bf16.msra.mxu0 0
    %103 = vmatpush.bf16.msra.mxu0 0
    %104 = vmatpush.bf16.msra.mxu0 0
    %105 = vmatpush.bf16.msra.mxu0 0
    %106 = vmatpush.bf16.msra.mxu0 0
    %107 = vmatpush.bf16.msra.mxu0 0
    %108 = vmatpush.bf16.msra.mxu0 %v95
    %109 = vmatpush.bf16.msra.mxu0 %v94
    %110 = vmatmul.bf16.gmra.mxu0 %v100
    %v111 = vpop.f32.mrf.mxu0
    %v112 = vadd.f32 0.0, %v111
    %v113 = vpop.f32.mrf.mxu0
    %v114 = vadd.f32 0.0, %v113
    %115 = vdwg.mxu0
    %vm116 = vcmask 523264
    %117 = vst.msk [vmem:[#allocation3] sm:$0xff] %vm116, %v112
    %118 = vst.msk [vmem:[#allocation3 + $0x8] sm:$0xff] %vm116, %v114
    // Predicated region
    $region18: #{transformer_forward.17} parent=1 // pred_check
      _
    $region19: #{transformer_forward.17} parent=1 // pred_check_branch
      %120 = sbr.rel (0) target = $region21
    $region20: #{transformer_forward.17} parent=1 // pred_region
      %122 = vsyncadd [#allocation4], 0
      %s123 = sshll.u32 [#allocation3], 4
      %s124 = int_to_ptr.vmem [resolvable:$true] %s123
      %s125 = sshll.u32 %s3, 4
      %s126 = int_to_ptr.hbm [resolvable:$true] %s125
      %131 = dma.vmem_to_hbm [thread:$0]  %s124, 256, %s126, [#allocation4], 128, 128, 8
    $region21: #{transformer_forward.17} parent=1 // pred_fallthru
      _
    // Predicated region
    $region22: #{transformer_forward.17} parent=1 // pred_check
      _
    $region23: #{transformer_forward.17} parent=1 // pred_check_branch
      %133 = sbr.rel (0) target = $region25
    $region24: #{transformer_forward.17} parent=1 // pred_region
      %135 = dma.done [#allocation4], 256
    $region25: #{transformer_forward.17} parent=1 // pred_fallthru
      _
    %136 = vsyncpa [#allocation4], 1

</llo_original>
